<compile_context>
chip_gen: v7x
topology: tpu7x:2x2x1
jax: 0.10.0
libtpu: 0.0.40
codegen_flags: <defaults>
</compile_context>

<pallas_src>
import math
import jax
import jax.numpy as jnp
from jax import lax
from jax.experimental import pallas as pl
from jax.experimental.pallas import tpu as pltpu


# ----------------------------------------------------------------------------
# Small helpers
# ----------------------------------------------------------------------------

def _row_tile(n, cap=512):
    """Largest row tile: whole slab if it fits the cap, else the biggest
    multiple-of-8 divisor of n not exceeding the cap."""
    if n <= cap or n % 8 != 0:
        return n
    t = cap - (cap % 8)
    while t >= 8:
        if n % t == 0:
            return t
        t -= 8
    return n


def _ln_rows(x, g, b, eps=1e-5):
    """Row-wise LayerNorm in f32 (statistics kept in f32 on all chips)."""
    mu = jnp.mean(x, axis=-1, keepdims=True)
    var = jnp.mean((x - mu) ** 2, axis=-1, keepdims=True)
    return (x - mu) * lax.rsqrt(var + eps) * g + b


def _bf16(x):
    return x.astype(jnp.bfloat16)


_PARALLEL_1D = pltpu.CompilerParams(dimension_semantics=("parallel",))


# ----------------------------------------------------------------------------
# Pallas kernels
# ----------------------------------------------------------------------------

def encoder_stack(x, pos, layers):
    """All encoder layers fused in one pallas_call.

    Each layer: h = relu((x + pos) @ W1 + b1); y = x + h @ W2 + b2; x = LN(y).
    The (rows, C) activation stays resident in VMEM across layers.
    """
    n, C = x.shape
    Lk = len(layers)
    F = layers[0]["w1"].shape[1]
    tm = _row_tile(n)

    w1s = jnp.stack([_bf16(l["w1"]) for l in layers])                 # (Lk, C, F)
    b1s = jnp.stack([l["b1"].reshape(1, -1) for l in layers])         # (Lk, 1, F)
    w2s = jnp.stack([_bf16(l["w2"]) for l in layers])                 # (Lk, F, C)
    b2s = jnp.stack([l["b2"].reshape(1, -1) for l in layers])         # (Lk, 1, C)
    gs = jnp.stack([l["g"].reshape(1, -1) for l in layers])           # (Lk, 1, C)
    bes = jnp.stack([l["b"].reshape(1, -1) for l in layers])          # (Lk, 1, C)

    def kernel(x_ref, p_ref, w1_ref, b1_ref, w2_ref, b2_ref, g_ref, be_ref,
               o_ref):
        h = x_ref[...]
        pos_t = p_ref[...]
        for l in range(Lk):                      # static unroll over layers
            a = jnp.dot(_bf16(h + pos_t), w1_ref[l],
                        preferred_element_type=jnp.float32) + b1_ref[l]
            a = jnp.maximum(a, 0.0)
            y = h + jnp.dot(_bf16(a), w2_ref[l],
                            preferred_element_type=jnp.float32) + b2_ref[l]
            h = _ln_rows(y, g_ref[l], be_ref[l])
        o_ref[...] = h

    return pl.pallas_call(
        kernel,
        out_shape=jax.ShapeDtypeStruct((n, C), jnp.float32),
        grid=(n // tm,),
        in_specs=[pl.BlockSpec((tm, C), lambda i: (i, 0)),
                  pl.BlockSpec((tm, C), lambda i: (i, 0)),
                  pl.BlockSpec((Lk, C, F), lambda i: (0, 0, 0)),
                  pl.BlockSpec((Lk, 1, F), lambda i: (0, 0, 0)),
                  pl.BlockSpec((Lk, F, C), lambda i: (0, 0, 0)),
                  pl.BlockSpec((Lk, 1, C), lambda i: (0, 0, 0)),
                  pl.BlockSpec((Lk, 1, C), lambda i: (0, 0, 0)),
                  pl.BlockSpec((Lk, 1, C), lambda i: (0, 0, 0))],
        out_specs=pl.BlockSpec((tm, C), lambda i: (i, 0)),
        compiler_params=_PARALLEL_1D,
    )(x, pos, w1s, b1s, w2s, b2s, gs, bes)


def linear_ln(x, w, b, g, be):
    """Fused Linear + LayerNorm (enc_output / enc_output_norm)."""
    n, cin = x.shape
    cout = w.shape[1]
    tm = _row_tile(n)

    def kernel(x_ref, w_ref, b_ref, g_ref, be_ref, o_ref):
        y = jnp.dot(_bf16(x_ref[...]), w_ref[...],
                    preferred_element_type=jnp.float32) + b_ref[...]
        o_ref[...] = _ln_rows(y, g_ref[...], be_ref[...])

    return pl.pallas_call(
        kernel,
        out_shape=jax.ShapeDtypeStruct((n, cout), jnp.float32),
        grid=(n // tm,),
        in_specs=[pl.BlockSpec((tm, cin), lambda i: (i, 0)),
                  pl.BlockSpec((cin, cout), lambda i: (0, 0)),
                  pl.BlockSpec((1, cout), lambda i: (0, 0)),
                  pl.BlockSpec((1, cout), lambda i: (0, 0)),
                  pl.BlockSpec((1, cout), lambda i: (0, 0))],
        out_specs=pl.BlockSpec((tm, cout), lambda i: (i, 0)),
        compiler_params=_PARALLEL_1D,
    )(x, _bf16(w), b.reshape(1, -1), g.reshape(1, -1), be.reshape(1, -1))


def layer_norm(x, g, be):
    n, c = x.shape
    tm = _row_tile(n)

    def kernel(x_ref, g_ref, be_ref, o_ref):
        o_ref[...] = _ln_rows(x_ref[...], g_ref[...], be_ref[...])

    return pl.pallas_call(
        kernel,
        out_shape=jax.ShapeDtypeStruct((n, c), jnp.float32),
        grid=(n // tm,),
        in_specs=[pl.BlockSpec((tm, c), lambda i: (i, 0)),
                  pl.BlockSpec((1, c), lambda i: (0, 0)),
                  pl.BlockSpec((1, c), lambda i: (0, 0))],
        out_specs=pl.BlockSpec((tm, c), lambda i: (i, 0)),
        compiler_params=_PARALLEL_1D,
    )(x, g.reshape(1, -1), be.reshape(1, -1))


def query_selection_heads(x, cls_p, bbox_p):
    """Fused class head (Linear) + bbox head (3-layer MLP) over output_memory."""
    n, C = x.shape
    nc = cls_p["w"].shape[1]
    h1d = bbox_p["w1"].shape[1]
    h2d = bbox_p["w2"].shape[1]
    tm = _row_tile(n)

    def kernel(x_ref, cw_ref, cb_ref, w1_ref, b1_ref, w2_ref, b2_ref,
               w3_ref, b3_ref, cls_ref, box_ref):
        xb = _bf16(x_ref[...])
        cls_ref[...] = jnp.dot(xb, cw_ref[...],
                               preferred_element_type=jnp.float32) + cb_ref[...]
        h1 = jnp.maximum(jnp.dot(xb, w1_ref[...],
                                 preferred_element_type=jnp.float32)
                         + b1_ref[...], 0.0)
        h2 = jnp.maximum(jnp.dot(_bf16(h1), w2_ref[...],
                                 preferred_element_type=jnp.float32)
                         + b2_ref[...], 0.0)
        box_ref[...] = jnp.dot(_bf16(h2), w3_ref[...],
                               preferred_element_type=jnp.float32) + b3_ref[...]

    return pl.pallas_call(
        kernel,
        out_shape=(jax.ShapeDtypeStruct((n, nc), jnp.float32),
                   jax.ShapeDtypeStruct((n, 4), jnp.float32)),
        grid=(n // tm,),
        in_specs=[pl.BlockSpec((tm, C), lambda i: (i, 0)),
                  pl.BlockSpec((C, nc), lambda i: (0, 0)),
                  pl.BlockSpec((1, nc), lambda i: (0, 0)),
                  pl.BlockSpec((C, h1d), lambda i: (0, 0)),
                  pl.BlockSpec((1, h1d), lambda i: (0, 0)),
                  pl.BlockSpec((h1d, h2d), lambda i: (0, 0)),
                  pl.BlockSpec((1, h2d), lambda i: (0, 0)),
                  pl.BlockSpec((h2d, 4), lambda i: (0, 0)),
                  pl.BlockSpec((1, 4), lambda i: (0, 0))],
        out_specs=(pl.BlockSpec((tm, nc), lambda i: (i, 0)),
                   pl.BlockSpec((tm, 4), lambda i: (i, 0))),
        compiler_params=_PARALLEL_1D,
    )(x, _bf16(cls_p["w"]), cls_p["b"].reshape(1, -1),
      _bf16(bbox_p["w1"]), bbox_p["b1"].reshape(1, -1),
      _bf16(bbox_p["w2"]), bbox_p["b2"].reshape(1, -1),
      _bf16(bbox_p["w3"]), bbox_p["b3"].reshape(1, -1))


def decoder_layer(q, mem_bf16, mask_bias, lp, bbox_p, norm_p):
    """One fused decoder layer per pallas_call (grid over batch):
    masked cross-attention + LN -> FFN (no pos) + LN -> decoder-norm
    -> bbox MLP head.  Returns (new_state, normed_state, bbox_delta).
    """
    bs, nq, C = q.shape
    S = mem_bf16.shape[1]
    F = lp["ffn"]["w1"].shape[1]
    scale = 1.0 / math.sqrt(C)

    def kernel(q_ref, m_ref, bias_ref, ag_ref, ab_ref,
               fw1_ref, fb1_ref, fw2_ref, fb2_ref, fg_ref, fbe_ref,
               ng_ref, nb_ref,
               bw1_ref, bb1_ref, bw2_ref, bb2_ref, bw3_ref, bb3_ref,
               o_ref, inter_ref, delta_ref):
        qb = q_ref[0]                               # (nq, C) f32
        mem = m_ref[0]                              # (S, C) bf16
        bias = bias_ref[0]                          # (1, S) f32
        # q @ mem^T without an explicit transpose (MXU transposed-RHS path).
        s = lax.dot_general(_bf16(qb), mem,
                            dimension_numbers=(((1,), (1,)), ((), ())),
                            preferred_element_type=jnp.float32) * scale + bias
        s = s - jnp.max(s, axis=-1, keepdims=True)
        p = jnp.exp(s)
        p = p * pl.reciprocal(jnp.sum(p, axis=-1, keepdims=True), approx=True)
        y = qb + jnp.dot(_bf16(p), mem, preferred_element_type=jnp.float32)
        x = _ln_rows(y, ag_ref[...], ab_ref[...])
        # FFN (decoder query_pos is None -> no pos operand at all)
        h = jnp.maximum(jnp.dot(_bf16(x), fw1_ref[...],
                                preferred_element_type=jnp.float32)
                        + fb1_ref[...], 0.0)
        y2 = x + jnp.dot(_bf16(h), fw2_ref[...],
                         preferred_element_type=jnp.float32) + fb2_ref[...]
        out = _ln_rows(y2, fg_ref[...], fbe_ref[...])
        o_ref[0] = out
        inter_ref[0] = _ln_rows(out, ng_ref[...], nb_ref[...])
        # bbox refinement head (3-layer MLP)
        h1 = jnp.maximum(jnp.dot(_bf16(out), bw1_ref[...],
                                 preferred_element_type=jnp.float32)
                         + bb1_ref[...], 0.0)
        h2 = jnp.maximum(jnp.dot(_bf16(h1), bw2_ref[...],
                                 preferred_element_type=jnp.float32)
                         + bb2_ref[...], 0.0)
        delta_ref[0] = jnp.dot(_bf16(h2), bw3_ref[...],
                               preferred_element_type=jnp.float32) + bb3_ref[...]

    vec = lambda a: a.reshape(1, -1)
    return pl.pallas_call(
        kernel,
        out_shape=(jax.ShapeDtypeStruct((bs, nq, C), jnp.float32),
                   jax.ShapeDtypeStruct((bs, nq, C), jnp.float32),
                   jax.ShapeDtypeStruct((bs, nq, 4), jnp.float32)),
        grid=(bs,),
        in_specs=[pl.BlockSpec((1, nq, C), lambda b: (b, 0, 0)),
                  pl.BlockSpec((1, S, C), lambda b: (b, 0, 0)),
                  pl.BlockSpec((1, 1, S), lambda b: (b, 0, 0)),
                  pl.BlockSpec((1, C), lambda b: (0, 0)),
                  pl.BlockSpec((1, C), lambda b: (0, 0)),
                  pl.BlockSpec((C, F), lambda b: (0, 0)),
                  pl.BlockSpec((1, F), lambda b: (0, 0)),
                  pl.BlockSpec((F, C), lambda b: (0, 0)),
                  pl.BlockSpec((1, C), lambda b: (0, 0)),
                  pl.BlockSpec((1, C), lambda b: (0, 0)),
                  pl.BlockSpec((1, C), lambda b: (0, 0)),
                  pl.BlockSpec((1, C), lambda b: (0, 0)),
                  pl.BlockSpec((1, C), lambda b: (0, 0)),
                  pl.BlockSpec((C, C), lambda b: (0, 0)),
                  pl.BlockSpec((1, C), lambda b: (0, 0)),
                  pl.BlockSpec((C, C), lambda b: (0, 0)),
                  pl.BlockSpec((1, C), lambda b: (0, 0)),
                  pl.BlockSpec((C, 4), lambda b: (0, 0)),
                  pl.BlockSpec((1, 4), lambda b: (0, 0))],
        out_specs=(pl.BlockSpec((1, nq, C), lambda b: (b, 0, 0)),
                   pl.BlockSpec((1, nq, C), lambda b: (b, 0, 0)),
                   pl.BlockSpec((1, nq, 4), lambda b: (b, 0, 0))),
        compiler_params=_PARALLEL_1D,
    )(q, mem_bf16, mask_bias,
      vec(lp["attn_g"]), vec(lp["attn_b"]),
      _bf16(lp["ffn"]["w1"]), vec(lp["ffn"]["b1"]),
      _bf16(lp["ffn"]["w2"]), vec(lp["ffn"]["b2"]),
      vec(lp["ffn"]["g"]), vec(lp["ffn"]["b"]),
      vec(norm_p["g"]), vec(norm_p["b"]),
      _bf16(bbox_p["w1"]), vec(bbox_p["b1"]),
      _bf16(bbox_p["w2"]), vec(bbox_p["b2"]),
      _bf16(bbox_p["w3"]), vec(bbox_p["b3"]))


# ----------------------------------------------------------------------------
# Parameters (deterministic, in-script)
# ----------------------------------------------------------------------------

def init_params(key, C, F, L, topk, num_classes, enc_layers, dec_layers):
    keys = iter(jax.random.split(key, 256))

    def nrm(shape, scale=0.02):
        return (scale * jax.random.normal(next(keys), shape)).astype(jnp.float32)

    def ln():
        return dict(g=jnp.ones((C,), jnp.float32), b=jnp.zeros((C,), jnp.float32))

    p = {}
    p["level_embeds"] = nrm((L, C), 1.0)                      # nn.init.normal_
    p["tgt_embed"] = nrm((topk, C))                           # learnt init query
    p["enc_output"] = dict(w=nrm((C, C)), b=jnp.zeros((C,), jnp.float32))
    p["enc_output_norm"] = ln()
    p["encoder"] = [dict(w1=nrm((C, F)), b1=jnp.zeros((F,), jnp.float32),
                         w2=nrm((F, C)), b2=jnp.zeros((C,), jnp.float32),
                         **ln()) for _ in range(enc_layers)]
    p["decoder"] = dict(
        num_layers=dec_layers,
        layers=[dict(attn_g=jnp.ones((C,), jnp.float32),
                     attn_b=jnp.zeros((C,), jnp.float32),
                     ffn=dict(w1=nrm((C, F)), b1=jnp.zeros((F,), jnp.float32),
                              w2=nrm((F, C)), b2=jnp.zeros((C,), jnp.float32),
                              **ln()))
                for _ in range(dec_layers)],
        bbox_embed=[dict(w1=nrm((C, C)), b1=jnp.zeros((C,), jnp.float32),
                         w2=nrm((C, C)), b2=jnp.zeros((C,), jnp.float32),
                         w3=nrm((C, 4)), b3=jnp.zeros((4,), jnp.float32))
                    for _ in range(dec_layers + 1)],
        class_embed=dict(w=nrm((C, num_classes)),
                         b=jnp.zeros((num_classes,), jnp.float32)),
        norm=ln(),
    )
    return p


# ----------------------------------------------------------------------------
# DINOTransformer forward (plain-JAX glue around the Pallas kernels)
# ----------------------------------------------------------------------------

def inverse_sigmoid(x, eps=1e-3):
    x = jnp.clip(x, 0.0, 1.0)
    return jnp.log(jnp.clip(x, eps, None) / jnp.clip(1.0 - x, eps, None))


def get_valid_ratio(mask):
    _, H, W = mask.shape
    valid_H = jnp.sum(~mask[:, :, 0], axis=1).astype(jnp.float32)
    valid_W = jnp.sum(~mask[:, 0, :], axis=1).astype(jnp.float32)
    return jnp.stack([valid_W / W, valid_H / H], axis=-1)  # (bs, 2) -> (w, h)


def get_reference_points(shapes, valid_ratios):
    ref_list = []
    for lvl, (H, W) in enumerate(shapes):
        ry, rx = jnp.meshgrid(
            jnp.linspace(0.5, H - 0.5, H, dtype=jnp.float32),
            jnp.linspace(0.5, W - 0.5, W, dtype=jnp.float32), indexing="ij")
        ry = ry.reshape(-1)[None] / (valid_ratios[:, None, lvl, 1] * H)
        rx = rx.reshape(-1)[None] / (valid_ratios[:, None, lvl, 0] * W)
        ref_list.append(jnp.stack((rx, ry), -1))
    ref = jnp.concatenate(ref_list, 1)
    return ref[:, :, None] * valid_ratios[:, None]  # (bs, S, L, 2)


def gen_encoder_output_proposals(params, memory, memory_padding_mask, shapes):
    N, S, C = memory.shape
    proposals = []
    cur = 0
    for lvl, (H, W) in enumerate(shapes):
        mask_l = memory_padding_mask[:, cur:cur + H * W].reshape(N, H, W, 1)
        valid_H = jnp.sum(~mask_l[:, :, 0, 0], axis=1).astype(jnp.float32)
        valid_W = jnp.sum(~mask_l[:, 0, :, 0], axis=1).astype(jnp.float32)
        gy, gx = jnp.meshgrid(
            jnp.linspace(0, H - 1, H, dtype=jnp.float32),
            jnp.linspace(0, W - 1, W, dtype=jnp.float32), indexing="ij")
        grid = jnp.concatenate([gx[..., None], gy[..., None]], -1)      # (H,W,2)
        scale = jnp.stack([valid_W, valid_H], -1).reshape(N, 1, 1, 2)
        grid = (grid[None] + 0.5) / scale                               # (N,H,W,2)
        wh = jnp.ones_like(grid) * 0.05 * (2.0 ** lvl)
        proposals.append(jnp.concatenate((grid, wh), -1).reshape(N, -1, 4))
        cur += H * W
    output_proposals = jnp.concatenate(proposals, 1)
    valid = jnp.all((output_proposals > 0.01) & (output_proposals < 0.99),
                    axis=-1, keepdims=True)
    output_proposals = jnp.log(output_proposals / (1.0 - output_proposals))
    output_proposals = jnp.where(memory_padding_mask[..., None], jnp.inf,
                                 output_proposals)
    output_proposals = jnp.where(~valid, jnp.inf, output_proposals)

    output_memory = jnp.where(memory_padding_mask[..., None], 0.0, memory)
    output_memory = jnp.where(~valid, 0.0, output_memory)
    # enc_output Linear + enc_output_norm LayerNorm (fused Pallas kernel)
    output_memory = linear_ln(output_memory.reshape(N * S, C),
                              params["enc_output"]["w"],
                              params["enc_output"]["b"],
                              params["enc_output_norm"]["g"],
                              params["enc_output_norm"]["b"]).reshape(N, S, C)
    return output_memory, output_proposals


def dino_transformer_forward(params, multi_level_feats, multi_level_masks,
                             multi_level_pos_embeds, query_embed, attn_masks,
                             two_stage_num_proposals):
    # ---------------- forward_projection ----------------
    feat_flat, mask_flat, pos_flat, shapes = [], [], [], []
    for lvl, (feat, mask, pos) in enumerate(zip(multi_level_feats,
                                                multi_level_masks,
                                                multi_level_pos_embeds)):
        bs, c, h, w = feat.shape
        shapes.append((h, w))
        feat_flat.append(feat.reshape(bs, c, h * w).transpose(0, 2, 1))
        mask_flat.append(mask.reshape(bs, h * w))
        lvl_pos = pos.reshape(bs, c, h * w).transpose(0, 2, 1) \
            + params["level_embeds"][lvl][None, None, :]
        pos_flat.append(lvl_pos)
    feat_flatten = jnp.concatenate(feat_flat, 1)                    # (bs,S,C)
    mask_flatten = jnp.concatenate(mask_flat, 1)                    # (bs,S) bool
    lvl_pos_embed_flatten = jnp.concatenate(pos_flat, 1)            # (bs,S,C)
    spatial_shapes = jnp.asarray(shapes, jnp.int32)
    level_start_index = jnp.concatenate(
        [jnp.zeros((1,), jnp.int32),
         jnp.cumsum(spatial_shapes.prod(1))[:-1].astype(jnp.int32)])
    valid_ratios = jnp.stack([get_valid_ratio(m) for m in multi_level_masks], 1)

    enc_reference_points = get_reference_points(shapes, valid_ratios)  # noqa: F841
    _ = level_start_index  # kept for parity with the PyTorch module

    bs, S, C = feat_flatten.shape

    # ---------------- encoder ----------------
    # TODO(synk): deformable-attention encoder replaced with pos-conditioned
    #             FFN + residual + LayerNorm layers (whole stack fused in a
    #             single Pallas kernel; activation stays VMEM-resident).
    memory = encoder_stack(feat_flatten.reshape(bs * S, C),
                           lvl_pos_embed_flatten.reshape(bs * S, C),
                           params["encoder"]).reshape(bs, S, C)

    # memory_kd_loss == 'none', memory_fusion == 'none'
    enc_memory = None
    backbone_memory = None

    # ---------------- query_selection ----------------
    dec = params["decoder"]
    output_memory, output_proposals = gen_encoder_output_proposals(
        params, memory, mask_flatten, shapes)

    dn_content_query, dn_anchor_boxes = query_embed  # (None, None) here

    enc_outputs_class, enc_coord_delta = query_selection_heads(
        output_memory.reshape(bs * S, C),
        dec["class_embed"], dec["bbox_embed"][dec["num_layers"]])
    enc_outputs_class = enc_outputs_class.reshape(bs, S, -1)
    enc_outputs_coord_unact = enc_coord_delta.reshape(bs, S, 4) + output_proposals

    topk = two_stage_num_proposals
    topk_proposals = lax.top_k(jnp.max(enc_outputs_class, -1), topk)[1]  # (bs,topk)
    topk_coords_unact = jnp.take_along_axis(
        enc_outputs_coord_unact, topk_proposals[..., None], axis=1)
    reference_points = jax.nn.sigmoid(lax.stop_gradient(topk_coords_unact))
    target_unact = jnp.take_along_axis(
        output_memory, topk_proposals[..., None], axis=1)

    # learnt_init_query=True, content_query_init_type='none'
    target = jnp.broadcast_to(params["tgt_embed"][None], (bs, topk, C))
    dn_content_query = None
    dn_anchor_boxes = None

    # ---------------- decoder ----------------
    # TODO(synk): deformable cross-attention replaced with dense masked
    #             cross-attention over the flattened memory; each decoder
    #             layer (attn+LN -> FFN+LN -> decoder-norm -> bbox MLP) is one
    #             fused Pallas kernel.
    mask_bias = jnp.where(mask_flatten, -1e9, 0.0).astype(jnp.float32)[:, None, :]
    mem_bf16 = memory.astype(jnp.bfloat16)      # cast once, reused every layer
    output = target
    ref = reference_points
    inter_states, inter_refs = [], []
    for l in range(dec["num_layers"]):
        output, inter, delta = decoder_layer(
            output, mem_bf16, mask_bias,
            dec["layers"][l], dec["bbox_embed"][l], dec["norm"])
        inter_states.append(inter)
        new_ref = jax.nn.sigmoid(delta + inverse_sigmoid(ref))
        inter_refs.append(new_ref)
        ref = lax.stop_gradient(new_ref)
    inter_states = jnp.stack(inter_states, 0)
    inter_references = jnp.stack(inter_refs, 0)

    nq = topk
    init_state = layer_norm(target.reshape(bs * nq, C),
                            dec["norm"]["g"], dec["norm"]["b"]).reshape(bs, nq, C)

    return (init_state, inter_states, reference_points, inter_references,
            target_unact, jax.nn.sigmoid(topk_coords_unact),
            dn_content_query, dn_anchor_boxes,
            jax.nn.sigmoid(output_proposals), enc_outputs_class,
            jax.nn.sigmoid(enc_outputs_coord_unact),
            enc_memory, backbone_memory)


# ----------------------------------------------------------------------------
# Driver
# ----------------------------------------------------------------------------

if __name__ == "__main__":
    C = 128             # embed_dim (lane-dense: multiple of 128)
    F = 256             # ffn hidden dim
    L = 2               # num_feature_levels (small)
    TOPK = 16           # two_stage_num_proposals (small)
    NUM_CLASSES = 4
    ENC_LAYERS = 2
    DEC_LAYERS = 2
    BS = 2
    LEVEL_HW = [(8, 8), (4, 4)]

    key = jax.random.PRNGKey(0)
    pkey, dkey = jax.random.split(key)
    params = init_params(pkey, C, F, L, TOPK, NUM_CLASSES, ENC_LAYERS, DEC_LAYERS)

    dkeys = iter(jax.random.split(dkey, 16))
    multi_level_feats = [jax.random.normal(next(dkeys), (BS, C, h, w),
                                           dtype=jnp.float32)
                         for (h, w) in LEVEL_HW]
    multi_level_masks = [jnp.zeros((BS, h, w), dtype=bool) for (h, w) in LEVEL_HW]
    multi_level_pos_embeds = [jax.random.normal(next(dkeys), (BS, C, h, w),
                                                dtype=jnp.float32)
                              for (h, w) in LEVEL_HW]
    query_embed = (None, None)   # no denoising queries
    attn_masks = None

    outputs = dino_transformer_forward(params, multi_level_feats,
                                       multi_level_masks,
                                       multi_level_pos_embeds, query_embed,
                                       attn_masks, TOPK)
    jax.block_until_ready(outputs)
    print("KERNEL_OK")
</pallas_src>

<mosaic_0001>
module attributes {stable_mosaic.version = 11 : i64} {
  func.func @kernel(%arg0: i32, %arg1: memref<160x128xf32, #tpu.memory_space<vmem>>, %arg2: memref<160x128xf32, #tpu.memory_space<vmem>>, %arg3: memref<2x128x256xbf16, #tpu.memory_space<vmem>>, %arg4: memref<2x1x256xf32, #tpu.memory_space<vmem>>, %arg5: memref<2x256x128xbf16, #tpu.memory_space<vmem>>, %arg6: memref<2x1x128xf32, #tpu.memory_space<vmem>>, %arg7: memref<2x1x128xf32, #tpu.memory_space<vmem>>, %arg8: memref<2x1x128xf32, #tpu.memory_space<vmem>>, %arg9: memref<160x128xf32, #tpu.memory_space<vmem>>) attributes {dimension_semantics = [#tpu.dimension_semantics<parallel>], iteration_bounds = array<i64: 1>, scalar_prefetch = 0 : i64, scratch_operands = 0 : i64, tpu.core_type = #tpu.core_type<tc>, window_params = [{transform_indices = @transform_0, window_bounds = array<i64: 160, 128>}, {transform_indices = @transform_1, window_bounds = array<i64: 160, 128>}, {pipeline_mode = #tpu.pipeline_mode<synchronous>, transform_indices = @transform_2, window_bounds = array<i64: 2, 128, 256>}, {pipeline_mode = #tpu.pipeline_mode<synchronous>, transform_indices = @transform_3, window_bounds = array<i64: 2, 1, 256>}, {pipeline_mode = #tpu.pipeline_mode<synchronous>, transform_indices = @transform_4, window_bounds = array<i64: 2, 256, 128>}, {pipeline_mode = #tpu.pipeline_mode<synchronous>, transform_indices = @transform_5, window_bounds = array<i64: 2, 1, 128>}, {pipeline_mode = #tpu.pipeline_mode<synchronous>, transform_indices = @transform_6, window_bounds = array<i64: 2, 1, 128>}, {pipeline_mode = #tpu.pipeline_mode<synchronous>, transform_indices = @transform_7, window_bounds = array<i64: 2, 1, 128>}, {transform_indices = @transform_8, window_bounds = array<i64: 160, 128>}]} {
    %c0 = arith.constant 0 : index
    %c0_0 = arith.constant 0 : index
    %0 = vector.load %arg1[%c0, %c0_0] : memref<160x128xf32, #tpu.memory_space<vmem>>, vector<160x128xf32>
    %c0_1 = arith.constant 0 : index
    %c0_2 = arith.constant 0 : index
    %1 = vector.load %arg2[%c0_1, %c0_2] : memref<160x128xf32, #tpu.memory_space<vmem>>, vector<160x128xf32>
    %2 = arith.addf %0, %1 : vector<160x128xf32>
    %3 = arith.truncf %2 : vector<160x128xf32> to vector<160x128xbf16>
    %c0_3 = arith.constant 0 : index
    %c0_4 = arith.constant 0 : index
    %c0_5 = arith.constant 0 : index
    %4 = vector.load %arg3[%c0_3, %c0_4, %c0_5] : memref<2x128x256xbf16, #tpu.memory_space<vmem>>, vector<1x128x256xbf16>
    %5 = vector.shape_cast %4 : vector<1x128x256xbf16> to vector<128x256xbf16>
    %cst = arith.constant dense<0.000000e+00> : vector<160x256xf32>
    %6 = tpu.matmul %3, %5, %cst {dimension_numbers = #tpu.dot_dimension_numbers<[1], [0], [0], [1], [0, 0, 1, 1], [], []>} : vector<160x128xbf16>, vector<128x256xbf16>, vector<160x256xf32> -> vector<160x256xf32>
    %c0_6 = arith.constant 0 : index
    %c0_7 = arith.constant 0 : index
    %c0_8 = arith.constant 0 : index
    %7 = vector.load %arg4[%c0_6, %c0_7, %c0_8] : memref<2x1x256xf32, #tpu.memory_space<vmem>>, vector<1x1x256xf32>
    %8 = vector.shape_cast %7 : vector<1x1x256xf32> to vector<1x256xf32>
    %9 = vector.broadcast %8 : vector<1x256xf32> to vector<160x256xf32>
    %10 = arith.addf %6, %9 : vector<160x256xf32>
    %cst_9 = arith.constant 0.000000e+00 : f32
    %11 = vector.broadcast %cst_9 : f32 to vector<160x256xf32>
    %12 = arith.maximumf %10, %11 : vector<160x256xf32>
    %13 = arith.truncf %12 : vector<160x256xf32> to vector<160x256xbf16>
    %c0_10 = arith.constant 0 : index
    %c0_11 = arith.constant 0 : index
    %c0_12 = arith.constant 0 : index
    %14 = vector.load %arg5[%c0_10, %c0_11, %c0_12] : memref<2x256x128xbf16, #tpu.memory_space<vmem>>, vector<1x256x128xbf16>
    %15 = vector.shape_cast %14 : vector<1x256x128xbf16> to vector<256x128xbf16>
    %cst_13 = arith.constant dense<0.000000e+00> : vector<160x128xf32>
    %16 = tpu.matmul %13, %15, %cst_13 {dimension_numbers = #tpu.dot_dimension_numbers<[1], [0], [0], [1], [0, 0, 1, 1], [], []>} : vector<160x256xbf16>, vector<256x128xbf16>, vector<160x128xf32> -> vector<160x128xf32>
    %17 = arith.addf %0, %16 : vector<160x128xf32>
    %c0_14 = arith.constant 0 : index
    %c0_15 = arith.constant 0 : index
    %c0_16 = arith.constant 0 : index
    %18 = vector.load %arg6[%c0_14, %c0_15, %c0_16] : memref<2x1x128xf32, #tpu.memory_space<vmem>>, vector<1x1x128xf32>
    %19 = vector.shape_cast %18 : vector<1x1x128xf32> to vector<1x128xf32>
    %20 = vector.broadcast %19 : vector<1x128xf32> to vector<160x128xf32>
    %21 = arith.addf %17, %20 : vector<160x128xf32>
    %c0_17 = arith.constant 0 : index
    %c0_18 = arith.constant 0 : index
    %c0_19 = arith.constant 0 : index
    %22 = vector.load %arg7[%c0_17, %c0_18, %c0_19] : memref<2x1x128xf32, #tpu.memory_space<vmem>>, vector<1x1x128xf32>
    %23 = vector.shape_cast %22 : vector<1x1x128xf32> to vector<1x128xf32>
    %c0_20 = arith.constant 0 : index
    %c0_21 = arith.constant 0 : index
    %c0_22 = arith.constant 0 : index
    %24 = vector.load %arg8[%c0_20, %c0_21, %c0_22] : memref<2x1x128xf32, #tpu.memory_space<vmem>>, vector<1x1x128xf32>
    %25 = vector.shape_cast %24 : vector<1x1x128xf32> to vector<1x128xf32>
    %cst_23 = arith.constant dense<0.000000e+00> : vector<160xf32>
    %26 = vector.multi_reduction <add>, %21, %cst_23 [1] : vector<160x128xf32> to vector<160xf32>
    %27 = vector.shape_cast %26 : vector<160xf32> to vector<160x1xf32>
    %cst_24 = arith.constant 1.280000e+02 : f32
    %28 = vector.broadcast %cst_24 : f32 to vector<160x1xf32>
    %29 = arith.divf %27, %28 : vector<160x1xf32>
    %30 = vector.broadcast %29 : vector<160x1xf32> to vector<160x128xf32>
    %31 = arith.subf %21, %30 : vector<160x128xf32>
    %32 = arith.mulf %31, %31 : vector<160x128xf32>
    %cst_25 = arith.constant dense<0.000000e+00> : vector<160xf32>
    %33 = vector.multi_reduction <add>, %32, %cst_25 [1] : vector<160x128xf32> to vector<160xf32>
    %34 = vector.shape_cast %33 : vector<160xf32> to vector<160x1xf32>
    %cst_26 = arith.constant 1.280000e+02 : f32
    %35 = vector.broadcast %cst_26 : f32 to vector<160x1xf32>
    %36 = arith.divf %34, %35 : vector<160x1xf32>
    %37 = vector.broadcast %29 : vector<160x1xf32> to vector<160x128xf32>
    %38 = arith.subf %21, %37 : vector<160x128xf32>
    %cst_27 = arith.constant 9.99999974E-6 : f32
    %39 = vector.broadcast %cst_27 : f32 to vector<160x1xf32>
    %40 = arith.addf %36, %39 : vector<160x1xf32>
    %41 = math.rsqrt %40 : vector<160x1xf32>
    %42 = vector.broadcast %41 : vector<160x1xf32> to vector<160x128xf32>
    %43 = arith.mulf %38, %42 : vector<160x128xf32>
    %44 = vector.broadcast %23 : vector<1x128xf32> to vector<160x128xf32>
    %45 = arith.mulf %43, %44 : vector<160x128xf32>
    %46 = vector.broadcast %25 : vector<1x128xf32> to vector<160x128xf32>
    %47 = arith.addf %45, %46 : vector<160x128xf32>
    %48 = arith.addf %47, %1 : vector<160x128xf32>
    %49 = arith.truncf %48 : vector<160x128xf32> to vector<160x128xbf16>
    %c1 = arith.constant 1 : index
    %c0_28 = arith.constant 0 : index
    %c0_29 = arith.constant 0 : index
    %50 = vector.load %arg3[%c1, %c0_28, %c0_29] : memref<2x128x256xbf16, #tpu.memory_space<vmem>>, vector<1x128x256xbf16>
    %51 = vector.shape_cast %50 : vector<1x128x256xbf16> to vector<128x256xbf16>
    %cst_30 = arith.constant dense<0.000000e+00> : vector<160x256xf32>
    %52 = tpu.matmul %49, %51, %cst_30 {dimension_numbers = #tpu.dot_dimension_numbers<[1], [0], [0], [1], [0, 0, 1, 1], [], []>} : vector<160x128xbf16>, vector<128x256xbf16>, vector<160x256xf32> -> vector<160x256xf32>
    %c1_31 = arith.constant 1 : index
    %c0_32 = arith.constant 0 : index
    %c0_33 = arith.constant 0 : index
    %53 = vector.load %arg4[%c1_31, %c0_32, %c0_33] : memref<2x1x256xf32, #tpu.memory_space<vmem>>, vector<1x1x256xf32>
    %54 = vector.shape_cast %53 : vector<1x1x256xf32> to vector<1x256xf32>
    %55 = vector.broadcast %54 : vector<1x256xf32> to vector<160x256xf32>
    %56 = arith.addf %52, %55 : vector<160x256xf32>
    %cst_34 = arith.constant 0.000000e+00 : f32
    %57 = vector.broadcast %cst_34 : f32 to vector<160x256xf32>
    %58 = arith.maximumf %56, %57 : vector<160x256xf32>
    %59 = arith.truncf %58 : vector<160x256xf32> to vector<160x256xbf16>
    %c1_35 = arith.constant 1 : index
    %c0_36 = arith.constant 0 : index
    %c0_37 = arith.constant 0 : index
    %60 = vector.load %arg5[%c1_35, %c0_36, %c0_37] : memref<2x256x128xbf16, #tpu.memory_space<vmem>>, vector<1x256x128xbf16>
    %61 = vector.shape_cast %60 : vector<1x256x128xbf16> to vector<256x128xbf16>
    %cst_38 = arith.constant dense<0.000000e+00> : vector<160x128xf32>
    %62 = tpu.matmul %59, %61, %cst_38 {dimension_numbers = #tpu.dot_dimension_numbers<[1], [0], [0], [1], [0, 0, 1, 1], [], []>} : vector<160x256xbf16>, vector<256x128xbf16>, vector<160x128xf32> -> vector<160x128xf32>
    %63 = arith.addf %47, %62 : vector<160x128xf32>
    %c1_39 = arith.constant 1 : index
    %c0_40 = arith.constant 0 : index
    %c0_41 = arith.constant 0 : index
    %64 = vector.load %arg6[%c1_39, %c0_40, %c0_41] : memref<2x1x128xf32, #tpu.memory_space<vmem>>, vector<1x1x128xf32>
    %65 = vector.shape_cast %64 : vector<1x1x128xf32> to vector<1x128xf32>
    %66 = vector.broadcast %65 : vector<1x128xf32> to vector<160x128xf32>
    %67 = arith.addf %63, %66 : vector<160x128xf32>
    %c1_42 = arith.constant 1 : index
    %c0_43 = arith.constant 0 : index
    %c0_44 = arith.constant 0 : index
    %68 = vector.load %arg7[%c1_42, %c0_43, %c0_44] : memref<2x1x128xf32, #tpu.memory_space<vmem>>, vector<1x1x128xf32>
    %69 = vector.shape_cast %68 : vector<1x1x128xf32> to vector<1x128xf32>
    %c1_45 = arith.constant 1 : index
    %c0_46 = arith.constant 0 : index
    %c0_47 = arith.constant 0 : index
    %70 = vector.load %arg8[%c1_45, %c0_46, %c0_47] : memref<2x1x128xf32, #tpu.memory_space<vmem>>, vector<1x1x128xf32>
    %71 = vector.shape_cast %70 : vector<1x1x128xf32> to vector<1x128xf32>
    %cst_48 = arith.constant dense<0.000000e+00> : vector<160xf32>
    %72 = vector.multi_reduction <add>, %67, %cst_48 [1] : vector<160x128xf32> to vector<160xf32>
    %73 = vector.shape_cast %72 : vector<160xf32> to vector<160x1xf32>
    %cst_49 = arith.constant 1.280000e+02 : f32
    %74 = vector.broadcast %cst_49 : f32 to vector<160x1xf32>
    %75 = arith.divf %73, %74 : vector<160x1xf32>
    %76 = vector.broadcast %75 : vector<160x1xf32> to vector<160x128xf32>
    %77 = arith.subf %67, %76 : vector<160x128xf32>
    %78 = arith.mulf %77, %77 : vector<160x128xf32>
    %cst_50 = arith.constant dense<0.000000e+00> : vector<160xf32>
    %79 = vector.multi_reduction <add>, %78, %cst_50 [1] : vector<160x128xf32> to vector<160xf32>
    %80 = vector.shape_cast %79 : vector<160xf32> to vector<160x1xf32>
    %cst_51 = arith.constant 1.280000e+02 : f32
    %81 = vector.broadcast %cst_51 : f32 to vector<160x1xf32>
    %82 = arith.divf %80, %81 : vector<160x1xf32>
    %83 = vector.broadcast %75 : vector<160x1xf32> to vector<160x128xf32>
    %84 = arith.subf %67, %83 : vector<160x128xf32>
    %cst_52 = arith.constant 9.99999974E-6 : f32
    %85 = vector.broadcast %cst_52 : f32 to vector<160x1xf32>
    %86 = arith.addf %82, %85 : vector<160x1xf32>
    %87 = math.rsqrt %86 : vector<160x1xf32>
    %88 = vector.broadcast %87 : vector<160x1xf32> to vector<160x128xf32>
    %89 = arith.mulf %84, %88 : vector<160x128xf32>
    %90 = vector.broadcast %69 : vector<1x128xf32> to vector<160x128xf32>
    %91 = arith.mulf %89, %90 : vector<160x128xf32>
    %92 = vector.broadcast %71 : vector<1x128xf32> to vector<160x128xf32>
    %93 = arith.addf %91, %92 : vector<160x128xf32>
    %c0_53 = arith.constant 0 : index
    %c0_54 = arith.constant 0 : index
    %94 = vector.load %arg9[%c0_53, %c0_54] : memref<160x128xf32, #tpu.memory_space<vmem>>, vector<160x128xf32>
    tpu.vector_store %arg9[%c0_53, %c0_54], %93 {strides = array<i32>} : memref<160x128xf32, #tpu.memory_space<vmem>>, vector<160x128xf32>,
    return
  }
  func.func @transform_0(%arg0: i32) -> (i32, i32) {
    %c0_i32 = arith.constant 0 : i32
    %c0_i32_0 = arith.constant 0 : i32
    return %arg0, %c0_i32 : i32, i32
  }
  func.func @transform_1(%arg0: i32) -> (i32, i32) {
    %c0_i32 = arith.constant 0 : i32
    %c0_i32_0 = arith.constant 0 : i32
    return %arg0, %c0_i32 : i32, i32
  }
  func.func @transform_2(%arg0: i32) -> (i32, i32, i32) {
    %c0_i32 = arith.constant 0 : i32
    %c0_i32_0 = arith.constant 0 : i32
    %c0_i32_1 = arith.constant 0 : i32
    %c0_i32_2 = arith.constant 0 : i32
    return %c0_i32, %c0_i32_0, %c0_i32_1 : i32, i32, i32
  }
  func.func @transform_3(%arg0: i32) -> (i32, i32, i32) {
    %c0_i32 = arith.constant 0 : i32
    %c0_i32_0 = arith.constant 0 : i32
    %c0_i32_1 = arith.constant 0 : i32
    %c0_i32_2 = arith.constant 0 : i32
    return %c0_i32, %c0_i32_0, %c0_i32_1 : i32, i32, i32
  }
  func.func @transform_4(%arg0: i32) -> (i32, i32, i32) {
    %c0_i32 = arith.constant 0 : i32
    %c0_i32_0 = arith.constant 0 : i32
    %c0_i32_1 = arith.constant 0 : i32
    %c0_i32_2 = arith.constant 0 : i32
    return %c0_i32, %c0_i32_0, %c0_i32_1 : i32, i32, i32
  }
  func.func @transform_5(%arg0: i32) -> (i32, i32, i32) {
    %c0_i32 = arith.constant 0 : i32
    %c0_i32_0 = arith.constant 0 : i32
    %c0_i32_1 = arith.constant 0 : i32
    %c0_i32_2 = arith.constant 0 : i32
    return %c0_i32, %c0_i32_0, %c0_i32_1 : i32, i32, i32
  }
  func.func @transform_6(%arg0: i32) -> (i32, i32, i32) {
    %c0_i32 = arith.constant 0 : i32
    %c0_i32_0 = arith.constant 0 : i32
    %c0_i32_1 = arith.constant 0 : i32
    %c0_i32_2 = arith.constant 0 : i32
    return %c0_i32, %c0_i32_0, %c0_i32_1 : i32, i32, i32
  }
  func.func @transform_7(%arg0: i32) -> (i32, i32, i32) {
    %c0_i32 = arith.constant 0 : i32
    %c0_i32_0 = arith.constant 0 : i32
    %c0_i32_1 = arith.constant 0 : i32
    %c0_i32_2 = arith.constant 0 : i32
    return %c0_i32, %c0_i32_0, %c0_i32_1 : i32, i32, i32
  }
  func.func @transform_8(%arg0: i32) -> (i32, i32) {
    %c0_i32 = arith.constant 0 : i32
    %c0_i32_0 = arith.constant 0 : i32
    return %arg0, %c0_i32 : i32, i32
  }
}

</mosaic_0001>

<llo_original>
// kernel: tpu_custom_call.1
$region0: #{tpu_custom_call.1}
  #allocation0 [shape = 'u32[]', space=smem, size = 0x4, offset = 0x4, fixed_abs, tag = 'smem constant byte address 0x4 - core index']
  #allocation1 [shape = 'u32[144,128]{1,0:T(1,128)}', space=vmem, size = 0x12000, scoped, tag = 'internal scratch']
  %s0 = inlined_call_operand.hbm [shape: f32[160,128], index: 0, kind: input, shape index: {}]
  %s1 = inlined_call_operand.hbm [shape: f32[160,128], index: 1, kind: input, shape index: {}]
  %s2 = inlined_call_operand.hbm [shape: bf16[2,128,256], index: 2, kind: input, shape index: {}]
  %s3 = inlined_call_operand.vmem [shape: f32[2,1,256], index: 3, kind: input, shape index: {}]
  %s4 = inlined_call_operand.hbm [shape: bf16[2,256,128], index: 4, kind: input, shape index: {}]
  %s5 = inlined_call_operand.vmem [shape: f32[2,1,128], index: 5, kind: input, shape index: {}]
  %s6 = inlined_call_operand.vmem [shape: f32[2,1,128], index: 6, kind: input, shape index: {}]
  %s7 = inlined_call_operand.vmem [shape: f32[2,1,128], index: 7, kind: input, shape index: {}]
  %s8 = inlined_call_operand.hbm [shape: f32[160,128], index: 8, kind: output, shape index: {}]
  %s9 = sld [smem:[#allocation0]]
  $region58: #{tpu_custom_call.1} parent=0
    _
  %s11 = ssub.s32 1, %s9
  %s12 = scalar_select 0, %s11, %s9
  $region1: #{tpu_custom_call.1} parent=0
    #allocation2 [shape = 'u8[81920]{0}', space=vmem, size = 0x14000, scoped, tag = 'input window, operand 0, single buffered']
    #allocation3 [shape = 's32[1]{0}', space=sflag, size = 0x4, scoped, tag = 'scoped memory for tpu_custom_call.1']
    #allocation4 [shape = 's32[1]{0}', space=sflag, size = 0x4, scoped, tag = 'scoped memory for tpu_custom_call.1']
    #allocation5 [shape = 'u8[81920]{0}', space=vmem, size = 0x14000, scoped, tag = 'input window, operand 1, single buffered']
    #allocation6 [shape = 's32[1]{0}', space=sflag, size = 0x4, scoped, tag = 'scoped memory for tpu_custom_call.1']
    #allocation7 [shape = 'u8[131072]{0}', space=vmem, size = 0x20000, scoped, tag = 'input window, operand 2, single buffered']
    #allocation8 [shape = 'u8[131072]{0}', space=vmem, size = 0x20000, scoped, tag = 'input window, operand 4, single buffered']
    #allocation9 [shape = 's32[1]{0}', space=sflag, size = 0x4, scoped, tag = 'scoped memory for tpu_custom_call.1']
    #allocation10 [shape = 'u8[81920]{0}', space=vmem, size = 0x14000, scoped, tag = 'output window, operand 0, single buffered']
    %13 = vsyncpa [#allocation3], 0
    %14 = vsyncpa [#allocation6], 0
    %15 = vsyncpa [#allocation9], 0
    %16 = vsyncpa [#allocation4], 0
    // Predicated region
    $region2: #{tpu_custom_call.1} parent=1 // pred_check
      _
    $region3: #{tpu_custom_call.1} parent=1 // pred_check_branch
      %18 = sbr.rel (0) target = $region5
    $region4: #{tpu_custom_call.1} parent=1 // pred_region
      %s20 = ssub.s32 2560, 2560
      %21 = vsyncadd [#allocation3], %s20
      %s22 = sshll.u32 [#allocation2], 4
      %s23 = int_to_ptr.vmem [resolvable:$true] %s22
      %28 = dma.hbm_to_vmem [thread:$0]  %s0, 2560, %s23, [#allocation3], 128, 128, 8
    $region5: #{tpu_custom_call.1} parent=1 // pred_fallthru
      _
    // Predicated region
    $region6: #{tpu_custom_call.1} parent=1 // pred_check
      _
    $region7: #{tpu_custom_call.1} parent=1 // pred_check_branch
      %30 = sbr.rel (0) target = $region9
    $region8: #{tpu_custom_call.1} parent=1 // pred_region
      %s32 = ssub.s32 2560, 2560
      %33 = vsyncadd [#allocation6], %s32
      %s34 = sshll.u32 [#allocation5], 4
      %s35 = int_to_ptr.vmem [resolvable:$true] %s34
      %40 = dma.hbm_to_vmem [thread:$0]  %s1, 2560, %s35, [#allocation6], 128, 128, 8
    $region9: #{tpu_custom_call.1} parent=1 // pred_fallthru
      _
    // Predicated region
    $region10: #{tpu_custom_call.1} parent=1 // pred_check
      _
    $region11: #{tpu_custom_call.1} parent=1 // pred_check_branch
      %42 = sbr.rel (0) target = $region13
    $region12: #{tpu_custom_call.1} parent=1 // pred_region
      %s44 = ssub.s32 4096, 4096
      %45 = vsyncadd [#allocation6], %s44
      %s46 = sshll.u32 [#allocation7], 4
      %s47 = int_to_ptr.vmem [resolvable:$true] %s46
      %52 = dma.hbm_to_vmem [thread:$0]  %s2, 4096, %s47, [#allocation6], 128, 128, 8
    $region13: #{tpu_custom_call.1} parent=1 // pred_fallthru
      _
    // Predicated region
    $region14: #{tpu_custom_call.1} parent=1 // pred_check
      _
    $region15: #{tpu_custom_call.1} parent=1 // pred_check_branch
      %54 = sbr.rel (0) target = $region17
    $region16: #{tpu_custom_call.1} parent=1 // pred_region
      _
    $region17: #{tpu_custom_call.1} parent=1 // pred_fallthru
      _
    // Predicated region
    $region18: #{tpu_custom_call.1} parent=1 // pred_check
      _
    $region19: #{tpu_custom_call.1} parent=1 // pred_check_branch
      %56 = sbr.rel (0) target = $region21
    $region20: #{tpu_custom_call.1} parent=1 // pred_region
      %s58 = ssub.s32 4096, 4096
      %59 = vsyncadd [#allocation9], %s58
      %s60 = sshll.u32 [#allocation8], 4
      %s61 = int_to_ptr.vmem [resolvable:$true] %s60
      %66 = dma.hbm_to_vmem [thread:$0]  %s4, 4096, %s61, [#allocation9], 64, 64, 4
    $region21: #{tpu_custom_call.1} parent=1 // pred_fallthru
      _
    // Predicated region
    $region22: #{tpu_custom_call.1} parent=1 // pred_check
      _
    $region23: #{tpu_custom_call.1} parent=1 // pred_check_branch
      %68 = sbr.rel (0) target = $region25
    $region24: #{tpu_custom_call.1} parent=1 // pred_region
      _
    $region25: #{tpu_custom_call.1} parent=1 // pred_fallthru
      _
    // Predicated region
    $region26: #{tpu_custom_call.1} parent=1 // pred_check
      _
    $region27: #{tpu_custom_call.1} parent=1 // pred_check_branch
      %70 = sbr.rel (0) target = $region29
    $region28: #{tpu_custom_call.1} parent=1 // pred_region
      _
    $region29: #{tpu_custom_call.1} parent=1 // pred_fallthru
      _
    // Predicated region
    $region30: #{tpu_custom_call.1} parent=1 // pred_check
      _
    $region31: #{tpu_custom_call.1} parent=1 // pred_check_branch
      %72 = sbr.rel (0) target = $region33
    $region32: #{tpu_custom_call.1} parent=1 // pred_region
      _
    $region33: #{tpu_custom_call.1} parent=1 // pred_fallthru
      _
    // Predicated region
    $region34: #{tpu_custom_call.1} parent=1 // pred_check
      _
    $region35: #{tpu_custom_call.1} parent=1 // pred_check_branch
      %74 = sbr.rel (0) target = $region37
    $region36: #{tpu_custom_call.1} parent=1 // pred_region
      %75 = dma.done [#allocation3], 2560
    $region37: #{tpu_custom_call.1} parent=1 // pred_fallthru
      _
    // Predicated region
    $region38: #{tpu_custom_call.1} parent=1 // pred_check
      _
    $region39: #{tpu_custom_call.1} parent=1 // pred_check_branch
      %77 = sbr.rel (0) target = $region41
    $region40: #{tpu_custom_call.1} parent=1 // pred_region
      %78 = dma.done [#allocation6], 2560
    $region41: #{tpu_custom_call.1} parent=1 // pred_fallthru
      _
    // Predicated region
    $region42: #{tpu_custom_call.1} parent=1 // pred_check
      _
    $region43: #{tpu_custom_call.1} parent=1 // pred_check_branch
      %80 = sbr.rel (0) target = $region45
    $region44: #{tpu_custom_call.1} parent=1 // pred_region
      %81 = dma.done [#allocation6], 4096
    $region45: #{tpu_custom_call.1} parent=1 // pred_fallthru
      _
    // Predicated region
    $region46: #{tpu_custom_call.1} parent=1 // pred_check
      _
    $region47: #{tpu_custom_call.1} parent=1 // pred_check_branch
      %83 = sbr.rel (0) target = $region49
    $region48: #{tpu_custom_call.1} parent=1 // pred_region
      %84 = dma.done [#allocation9], 4096
    $region49: #{tpu_custom_call.1} parent=1 // pred_fallthru
      _
    %v86 = vld [vmem:[#allocation2] sm:$0xff]
    %v87 = vld [vmem:[#allocation2 + $0x8] sm:$0xff]
    %v88 = vld [vmem:[#allocation2 + $0x10] sm:$0xff]
    %v89 = vld [vmem:[#allocation2 + $0x18] sm:$0xff]
    %v90 = vld [vmem:[#allocation2 + $0x20] sm:$0xff]
    %v91 = vld [vmem:[#allocation2 + $0x28] sm:$0xff]
    %v92 = vld [vmem:[#allocation2 + $0x30] sm:$0xff]
    %v93 = vld [vmem:[#allocation2 + $0x38] sm:$0xff]
    %v94 = vld [vmem:[#allocation2 + $0x40] sm:$0xff]
    %v95 = vld [vmem:[#allocation2 + $0x48] sm:$0xff]
    %v96 = vld [vmem:[#allocation2 + $0x50] sm:$0xff]
    %v97 = vld [vmem:[#allocation2 + $0x58] sm:$0xff]
    %v98 = vld [vmem:[#allocation2 + $0x60] sm:$0xff]
    %v99 = vld [vmem:[#allocation2 + $0x68] sm:$0xff]
    %v100 = vld [vmem:[#allocation2 + $0x70] sm:$0xff]
    %v101 = vld [vmem:[#allocation2 + $0x78] sm:$0xff]
    %v102 = vld [vmem:[#allocation2 + $0x80] sm:$0xff]
    %v103 = vld [vmem:[#allocation2 + $0x88] sm:$0xff]
    %v104 = vld [vmem:[#allocation2 + $0x90] sm:$0xff]
    %v105 = vld [vmem:[#allocation2 + $0x98] sm:$0xff]
    %v106 = vld [vmem:[#allocation5] sm:$0xff]
    %v107 = vld [vmem:[#allocation5 + $0x8] sm:$0xff]
    %v108 = vld [vmem:[#allocation5 + $0x10] sm:$0xff]
    %v109 = vld [vmem:[#allocation5 + $0x18] sm:$0xff]
    %v110 = vld [vmem:[#allocation5 + $0x20] sm:$0xff]
    %v111 = vld [vmem:[#allocation5 + $0x28] sm:$0xff]
    %v112 = vld [vmem:[#allocation5 + $0x30] sm:$0xff]
    %v113 = vld [vmem:[#allocation5 + $0x38] sm:$0xff]
    %v114 = vld [vmem:[#allocation5 + $0x40] sm:$0xff]
    %v115 = vld [vmem:[#allocation5 + $0x48] sm:$0xff]
    %v116 = vld [vmem:[#allocation5 + $0x50] sm:$0xff]
    %v117 = vld [vmem:[#allocation5 + $0x58] sm:$0xff]
    %v118 = vld [vmem:[#allocation5 + $0x60] sm:$0xff]
    %v119 = vld [vmem:[#allocation5 + $0x68] sm:$0xff]
    %v120 = vld [vmem:[#allocation5 + $0x70] sm:$0xff]
    %v121 = vld [vmem:[#allocation5 + $0x78] sm:$0xff]
    %v122 = vld [vmem:[#allocation5 + $0x80] sm:$0xff]
    %v123 = vld [vmem:[#allocation5 + $0x88] sm:$0xff]
    %v124 = vld [vmem:[#allocation5 + $0x90] sm:$0xff]
    %v125 = vld [vmem:[#allocation5 + $0x98] sm:$0xff]
    %v126 = vadd.f32 %v86, %v106
    %v127 = vadd.f32 %v87, %v107
    %v128 = vadd.f32 %v88, %v108
    %v129 = vadd.f32 %v89, %v109
    %v130 = vadd.f32 %v90, %v110
    %v131 = vadd.f32 %v91, %v111
    %v132 = vadd.f32 %v92, %v112
    %v133 = vadd.f32 %v93, %v113
    %v134 = vadd.f32 %v94, %v114
    %v135 = vadd.f32 %v95, %v115
    %v136 = vadd.f32 %v96, %v116
    %v137 = vadd.f32 %v97, %v117
    %v138 = vadd.f32 %v98, %v118
    %v139 = vadd.f32 %v99, %v119
    %v140 = vadd.f32 %v100, %v120
    %v141 = vadd.f32 %v101, %v121
    %v142 = vadd.f32 %v102, %v122
    %v143 = vadd.f32 %v103, %v123
    %v144 = vadd.f32 %v104, %v124
    %v145 = vadd.f32 %v105, %v125
    %v146 = vpack.c.bf16 %v127, %v126
    %v147 = vpack.c.bf16 %v129, %v128
    %v148 = vpack.c.bf16 %v131, %v130
    %v149 = vpack.c.bf16 %v133, %v132
    %v150 = vpack.c.bf16 %v135, %v134
    %v151 = vpack.c.bf16 %v137, %v136
    %v152 = vpack.c.bf16 %v139, %v138
    %v153 = vpack.c.bf16 %v141, %v140
    %v154 = vpack.c.bf16 %v143, %v142
    %v155 = vpack.c.bf16 %v145, %v144
    %v156 = vld [vmem:[#allocation7] sm:$0xff]
    %v157 = vld [vmem:[#allocation7 + $0x8] sm:$0xff]
    %v158 = vld [vmem:[#allocation7 + $0x10] sm:$0xff]
    %v159 = vld [vmem:[#allocation7 + $0x18] sm:$0xff]
    %v160 = vld [vmem:[#allocation7 + $0x20] sm:$0xff]
    %v161 = vld [vmem:[#allocation7 + $0x28] sm:$0xff]
    %v162 = vld [vmem:[#allocation7 + $0x30] sm:$0xff]
    %v163 = vld [vmem:[#allocation7 + $0x38] sm:$0xff]
    %v164 = vld [vmem:[#allocation7 + $0x40] sm:$0xff]
    %v165 = vld [vmem:[#allocation7 + $0x48] sm:$0xff]
    %v166 = vld [vmem:[#allocation7 + $0x50] sm:$0xff]
    %v167 = vld [vmem:[#allocation7 + $0x58] sm:$0xff]
    %v168 = vld [vmem:[#allocation7 + $0x60] sm:$0xff]
    %v169 = vld [vmem:[#allocation7 + $0x68] sm:$0xff]
    %v170 = vld [vmem:[#allocation7 + $0x70] sm:$0xff]
    %v171 = vld [vmem:[#allocation7 + $0x78] sm:$0xff]
    %v172 = vld [vmem:[%s3] sm:$0x3]
    %v174 = vlaneseq
    %v175 = vshrl.u32 %v174, 7
    %v176 = vsub.s32 0, %v175
    %v177 = vrot.slane %v172, %v176
    %v178 = vlaneseq
    %v179 = vshrl.u32 %v178, 7
    %v180 = vsub.s32 1, %v179
    %v181 = vrot.slane %v172, %v180
    %v200 = vunpack.c.l.b16 %v156
    %v201 = vunpack.c.h.b16 %v156
    %v202 = vunpack.c.l.b16 %v157
    %v203 = vunpack.c.h.b16 %v157
    %v204 = vunpack.c.l.b16 %v158
    %v205 = vunpack.c.h.b16 %v158
    %v206 = vunpack.c.l.b16 %v159
    %v207 = vunpack.c.h.b16 %v159
    %v208 = vunpack.c.l.b16 %v160
    %v209 = vunpack.c.h.b16 %v160
    %v210 = vunpack.c.l.b16 %v161
    %v211 = vunpack.c.h.b16 %v161
    %v212 = vunpack.c.l.b16 %v162
    %v213 = vunpack.c.h.b16 %v162
    %v214 = vunpack.c.l.b16 %v163
    %v215 = vunpack.c.h.b16 %v163
    %v216 = vunpack.c.l.b16 %v164
    %v217 = vunpack.c.h.b16 %v164
    %v218 = vunpack.c.l.b16 %v165
    %v219 = vunpack.c.h.b16 %v165
    %v220 = vunpack.c.l.b16 %v166
    %v221 = vunpack.c.h.b16 %v166
    %v222 = vunpack.c.l.b16 %v167
    %v223 = vunpack.c.h.b16 %v167
    %v224 = vunpack.c.l.b16 %v168
    %v225 = vunpack.c.h.b16 %v168
    %v226 = vunpack.c.l.b16 %v169
    %v227 = vunpack.c.h.b16 %v169
    %v228 = vunpack.c.l.b16 %v170
    %v229 = vunpack.c.h.b16 %v170
    %v230 = vunpack.c.l.b16 %v171
    %v231 = vunpack.c.h.b16 %v171
    %v232 = vpack.c.b16 %v202, %v200
    %v233 = vpack.c.b16 %v203, %v201
    %v234 = vpack.c.b16 %v206, %v204
    %v235 = vpack.c.b16 %v207, %v205
    %v236 = vpack.c.b16 %v210, %v208
    %v237 = vpack.c.b16 %v211, %v209
    %v238 = vpack.c.b16 %v214, %v212
    %v239 = vpack.c.b16 %v215, %v213
    %v240 = vpack.c.b16 %v218, %v216
    %v241 = vpack.c.b16 %v219, %v217
    %v242 = vpack.c.b16 %v222, %v220
    %v243 = vpack.c.b16 %v223, %v221
    %v244 = vpack.c.b16 %v226, %v224
    %v245 = vpack.c.b16 %v227, %v225
    %v246 = vpack.c.b16 %v230, %v228
    %v247 = vpack.c.b16 %v231, %v229
    %264 = vmatprep.subr.bf16.mxu0 %v233
    %265 = vmatpush1.bf16.msra.mxu0 %v232
    %266 = vmatprep.subr.bf16.mxu0 %v235
    %267 = vmatpush1.bf16.msra.mxu0 %v234
    %268 = vmatprep.subr.bf16.mxu0 %v237
    %269 = vmatpush1.bf16.msra.mxu0 %v236
    %270 = vmatprep.subr.bf16.mxu0 %v239
    %271 = vmatpush1.bf16.msra.mxu0 %v238
    %272 = vmatprep.subr.bf16.mxu0 %v241
    %273 = vmatpush1.bf16.msra.mxu0 %v240
    %274 = vmatprep.subr.bf16.mxu0 %v243
    %275 = vmatpush1.bf16.msra.mxu0 %v242
    %276 = vmatprep.subr.bf16.mxu0 %v245
    %277 = vmatpush1.bf16.msra.mxu0 %v244
    %278 = vmatprep.subr.bf16.mxu0 %v247
    %279 = vmatpush1.bf16.msra.mxu0 %v246
    %280 = vmatprep.subr.bf16.mxu0 0
    %281 = vmatpush1.bf16.msra.mxu0 0
    %282 = vmatprep.subr.bf16.mxu0 0
    %283 = vmatpush1.bf16.msra.mxu0 0
    %284 = vmatprep.subr.bf16.mxu0 0
    %285 = vmatpush1.bf16.msra.mxu0 0
    %286 = vmatprep.subr.bf16.mxu0 0
    %287 = vmatpush1.bf16.msra.mxu0 0
    %288 = vmatprep.subr.bf16.mxu0 0
    %289 = vmatpush1.bf16.msra.mxu0 0
    %290 = vmatprep.subr.bf16.mxu0 0
    %291 = vmatpush1.bf16.msra.mxu0 0
    %292 = vmatprep.subr.bf16.mxu0 0
    %293 = vmatpush1.bf16.msra.mxu0 0
    %294 = vmatprep.subr.bf16.mxu0 0
    %295 = vmatpush1.bf16.msra.mxu0 0
    %296 = vmatprep.mubr.bf16.mxu0 0
    %297 = vmatmul.mubr.bf16.gmra.mrb[0].mxu0 %v146
    %v298 = vpop.f32.mrb[0].mxu0
    %v299 = vadd.f32 %v177, %v298
    %v300 = vpop.f32.mrb[0].mxu0
    %v301 = vadd.f32 %v181, %v300
    %v302 = vpop.f32.mrb[0].mxu0
    %v303 = vadd.f32 %v177, %v302
    %v304 = vpop.f32.mrb[0].mxu0
    %v305 = vadd.f32 %v181, %v304
    %306 = vmatprep.mubr.bf16.mxu0 0
    %307 = vmatmul.mubr.bf16.gmra.mrb[0].mxu0 %v147
    %v308 = vpop.f32.mrb[0].mxu0
    %v309 = vadd.f32 %v177, %v308
    %v310 = vpop.f32.mrb[0].mxu0
    %v311 = vadd.f32 %v181, %v310
    %v312 = vpop.f32.mrb[0].mxu0
    %v313 = vadd.f32 %v177, %v312
    %v314 = vpop.f32.mrb[0].mxu0
    %v315 = vadd.f32 %v181, %v314
    %316 = vmatprep.mubr.bf16.mxu0 0
    %317 = vmatmul.mubr.bf16.gmra.mrb[0].mxu0 %v148
    %v318 = vpop.f32.mrb[0].mxu0
    %v319 = vadd.f32 %v177, %v318
    %v320 = vpop.f32.mrb[0].mxu0
    %v321 = vadd.f32 %v181, %v320
    %v322 = vpop.f32.mrb[0].mxu0
    %v323 = vadd.f32 %v177, %v322
    %v324 = vpop.f32.mrb[0].mxu0
    %v325 = vadd.f32 %v181, %v324
    %326 = vmatprep.mubr.bf16.mxu0 0
    %327 = vmatmul.mubr.bf16.gmra.mrb[0].mxu0 %v149
    %v328 = vpop.f32.mrb[0].mxu0
    %v329 = vadd.f32 %v177, %v328
    %v330 = vpop.f32.mrb[0].mxu0
    %v331 = vadd.f32 %v181, %v330
    %v332 = vpop.f32.mrb[0].mxu0
    %v333 = vadd.f32 %v177, %v332
    %v334 = vpop.f32.mrb[0].mxu0
    %v335 = vadd.f32 %v181, %v334
    %336 = vmatprep.mubr.bf16.mxu0 0
    %337 = vmatmul.mubr.bf16.gmra.mrb[0].mxu0 %v150
    %v338 = vpop.f32.mrb[0].mxu0
    %v339 = vadd.f32 %v177, %v338
    %v340 = vpop.f32.mrb[0].mxu0
    %v341 = vadd.f32 %v181, %v340
    %v342 = vpop.f32.mrb[0].mxu0
    %v343 = vadd.f32 %v177, %v342
    %v344 = vpop.f32.mrb[0].mxu0
    %v345 = vadd.f32 %v181, %v344
    %346 = vmatprep.mubr.bf16.mxu0 0
    %347 = vmatmul.mubr.bf16.gmra.mrb[0].mxu0 %v151
    %v348 = vpop.f32.mrb[0].mxu0
    %v349 = vadd.f32 %v177, %v348
    %v350 = vpop.f32.mrb[0].mxu0
    %v351 = vadd.f32 %v181, %v350
    %v352 = vpop.f32.mrb[0].mxu0
    %v353 = vadd.f32 %v177, %v352
    %v354 = vpop.f32.mrb[0].mxu0
    %v355 = vadd.f32 %v181, %v354
    %356 = vmatprep.mubr.bf16.mxu0 0
    %357 = vmatmul.mubr.bf16.gmra.mrb[0].mxu0 %v152
    %v358 = vpop.f32.mrb[0].mxu0
    %v359 = vadd.f32 %v177, %v358
    %v360 = vpop.f32.mrb[0].mxu0
    %v361 = vadd.f32 %v181, %v360
    %v362 = vpop.f32.mrb[0].mxu0
    %v363 = vadd.f32 %v177, %v362
    %v364 = vpop.f32.mrb[0].mxu0
    %v365 = vadd.f32 %v181, %v364
    %366 = vmatprep.mubr.bf16.mxu0 0
    %367 = vmatmul.mubr.bf16.gmra.mrb[0].mxu0 %v153
    %v368 = vpop.f32.mrb[0].mxu0
    %v369 = vadd.f32 %v177, %v368
    %v370 = vpop.f32.mrb[0].mxu0
    %v371 = vadd.f32 %v181, %v370
    %v372 = vpop.f32.mrb[0].mxu0
    %v373 = vadd.f32 %v177, %v372
    %v374 = vpop.f32.mrb[0].mxu0
    %v375 = vadd.f32 %v181, %v374
    %376 = vmatprep.mubr.bf16.mxu0 0
    %377 = vmatmul.mubr.bf16.gmra.mrb[0].mxu0 %v154
    %v378 = vpop.f32.mrb[0].mxu0
    %v379 = vadd.f32 %v177, %v378
    %v380 = vpop.f32.mrb[0].mxu0
    %v381 = vadd.f32 %v181, %v380
    %v382 = vpop.f32.mrb[0].mxu0
    %v383 = vadd.f32 %v177, %v382
    %v384 = vpop.f32.mrb[0].mxu0
    %v385 = vadd.f32 %v181, %v384
    %386 = vmatprep.mubr.bf16.mxu0 0
    %387 = vmatmul.mubr.bf16.gmra.mrb[0].mxu0 %v155
    %v388 = vpop.f32.mrb[0].mxu0
    %v389 = vadd.f32 %v177, %v388
    %v390 = vpop.f32.mrb[0].mxu0
    %v391 = vadd.f32 %v181, %v390
    %v392 = vpop.f32.mrb[0].mxu0
    %v393 = vadd.f32 %v177, %v392
    %v394 = vpop.f32.mrb[0].mxu0
    %v395 = vadd.f32 %v181, %v394
    %396 = vdwg.mxu0
    %v397 = vmax.f32 %v299, 0.0
    %v398 = vmax.f32 %v301, 0.0
    %v399 = vmax.f32 %v303, 0.0
    %v400 = vmax.f32 %v305, 0.0
    %v401 = vmax.f32 %v309, 0.0
    %v402 = vmax.f32 %v311, 0.0
    %v403 = vmax.f32 %v313, 0.0
    %v404 = vmax.f32 %v315, 0.0
    %v405 = vmax.f32 %v319, 0.0
    %v406 = vmax.f32 %v321, 0.0
    %v407 = vmax.f32 %v323, 0.0
    %v408 = vmax.f32 %v325, 0.0
    %v409 = vmax.f32 %v329, 0.0
    %v410 = vmax.f32 %v331, 0.0
    %v411 = vmax.f32 %v333, 0.0
    %v412 = vmax.f32 %v335, 0.0
    %v413 = vmax.f32 %v339, 0.0
    %v414 = vmax.f32 %v341, 0.0
    %v415 = vmax.f32 %v343, 0.0
    %v416 = vmax.f32 %v345, 0.0
    %v417 = vmax.f32 %v349, 0.0
    %v418 = vmax.f32 %v351, 0.0
    %v419 = vmax.f32 %v353, 0.0
    %v420 = vmax.f32 %v355, 0.0
    %v421 = vmax.f32 %v359, 0.0
    %v422 = vmax.f32 %v361, 0.0
    %v423 = vmax.f32 %v363, 0.0
    %v424 = vmax.f32 %v365, 0.0
    %v425 = vmax.f32 %v369, 0.0
    %v426 = vmax.f32 %v371, 0.0
    %v427 = vmax.f32 %v373, 0.0
    %v428 = vmax.f32 %v375, 0.0
    %v429 = vmax.f32 %v379, 0.0
    %v430 = vmax.f32 %v381, 0.0
    %v431 = vmax.f32 %v383, 0.0
    %v432 = vmax.f32 %v385, 0.0
    %v433 = vmax.f32 %v389, 0.0
    %v434 = vmax.f32 %v391, 0.0
    %v435 = vmax.f32 %v393, 0.0
    %v436 = vmax.f32 %v395, 0.0
    %v437 = vpack.c.bf16 %v399, %v397
    %v438 = vpack.c.bf16 %v400, %v398
    %v439 = vpack.c.bf16 %v403, %v401
    %v440 = vpack.c.bf16 %v404, %v402
    %v441 = vpack.c.bf16 %v407, %v405
    %v442 = vpack.c.bf16 %v408, %v406
    %v443 = vpack.c.bf16 %v411, %v409
    %v444 = vpack.c.bf16 %v412, %v410
    %v445 = vpack.c.bf16 %v415, %v413
    %v446 = vpack.c.bf16 %v416, %v414
    %v447 = vpack.c.bf16 %v419, %v417
    %v448 = vpack.c.bf16 %v420, %v418
    %v449 = vpack.c.bf16 %v423, %v421
    %v450 = vpack.c.bf16 %v424, %v422
    %v451 = vpack.c.bf16 %v427, %v425
    %v452 = vpack.c.bf16 %v428, %v426
    %v453 = vpack.c.bf16 %v431, %v429
    %v454 = vpack.c.bf16 %v432, %v430
    %v455 = vpack.c.bf16 %v435, %v433
    %v456 = vpack.c.bf16 %v436, %v434
    %v457 = vld [vmem:[#allocation8] sm:$0xf]
    %v458 = vld [vmem:[#allocation8 + $0x4] sm:$0xf]
    %v459 = vld [vmem:[#allocation8 + $0x8] sm:$0xf]
    %v460 = vld [vmem:[#allocation8 + $0xc] sm:$0xf]
    %v461 = vld [vmem:[#allocation8 + $0x10] sm:$0xf]
    %v462 = vld [vmem:[#allocation8 + $0x14] sm:$0xf]
    %v463 = vld [vmem:[#allocation8 + $0x18] sm:$0xf]
    %v464 = vld [vmem:[#allocation8 + $0x1c] sm:$0xf]
    %v465 = vld [vmem:[#allocation8 + $0x20] sm:$0xf]
    %v466 = vld [vmem:[#allocation8 + $0x24] sm:$0xf]
    %v467 = vld [vmem:[#allocation8 + $0x28] sm:$0xf]
    %v468 = vld [vmem:[#allocation8 + $0x2c] sm:$0xf]
    %v469 = vld [vmem:[#allocation8 + $0x30] sm:$0xf]
    %v470 = vld [vmem:[#allocation8 + $0x34] sm:$0xf]
    %v471 = vld [vmem:[#allocation8 + $0x38] sm:$0xf]
    %v472 = vld [vmem:[#allocation8 + $0x3c] sm:$0xf]
    %v473 = vld [vmem:[#allocation8 + $0x40] sm:$0xf]
    %v474 = vld [vmem:[#allocation8 + $0x44] sm:$0xf]
    %v475 = vld [vmem:[#allocation8 + $0x48] sm:$0xf]
    %v476 = vld [vmem:[#allocation8 + $0x4c] sm:$0xf]
    %v477 = vld [vmem:[#allocation8 + $0x50] sm:$0xf]
    %v478 = vld [vmem:[#allocation8 + $0x54] sm:$0xf]
    %v479 = vld [vmem:[#allocation8 + $0x58] sm:$0xf]
    %v480 = vld [vmem:[#allocation8 + $0x5c] sm:$0xf]
    %v481 = vld [vmem:[#allocation8 + $0x60] sm:$0xf]
    %v482 = vld [vmem:[#allocation8 + $0x64] sm:$0xf]
    %v483 = vld [vmem:[#allocation8 + $0x68] sm:$0xf]
    %v484 = vld [vmem:[#allocation8 + $0x6c] sm:$0xf]
    %v485 = vld [vmem:[#allocation8 + $0x70] sm:$0xf]
    %v486 = vld [vmem:[#allocation8 + $0x74] sm:$0xf]
    %v487 = vld [vmem:[#allocation8 + $0x78] sm:$0xf]
    %v488 = vld [vmem:[#allocation8 + $0x7c] sm:$0xf]
    %v521 = vunpack.c.l.b16 %v457
    %v522 = vunpack.c.l.b16 %v458
    %v523 = vunpack.c.l.b16 %v459
    %v524 = vunpack.c.l.b16 %v460
    %v525 = vunpack.c.l.b16 %v461
    %v526 = vunpack.c.l.b16 %v462
    %v527 = vunpack.c.l.b16 %v463
    %v528 = vunpack.c.l.b16 %v464
    %v529 = vunpack.c.l.b16 %v465
    %v530 = vunpack.c.l.b16 %v466
    %v531 = vunpack.c.l.b16 %v467
    %v532 = vunpack.c.l.b16 %v468
    %v533 = vunpack.c.l.b16 %v469
    %v534 = vunpack.c.l.b16 %v470
    %v535 = vunpack.c.l.b16 %v471
    %v536 = vunpack.c.l.b16 %v472
    %v537 = vunpack.c.l.b16 %v473
    %v538 = vunpack.c.l.b16 %v474
    %v539 = vunpack.c.l.b16 %v475
    %v540 = vunpack.c.l.b16 %v476
    %v541 = vunpack.c.l.b16 %v477
    %v542 = vunpack.c.l.b16 %v478
    %v543 = vunpack.c.l.b16 %v479
    %v544 = vunpack.c.l.b16 %v480
    %v545 = vunpack.c.l.b16 %v481
    %v546 = vunpack.c.l.b16 %v482
    %v547 = vunpack.c.l.b16 %v483
    %v548 = vunpack.c.l.b16 %v484
    %v549 = vunpack.c.l.b16 %v485
    %v550 = vunpack.c.l.b16 %v486
    %v551 = vunpack.c.l.b16 %v487
    %v552 = vunpack.c.l.b16 %v488
    %v553 = vpack.c.b16 %v522, %v521
    %v554 = vpack.c.b16 %v524, %v523
    %v555 = vpack.c.b16 %v526, %v525
    %v556 = vpack.c.b16 %v528, %v527
    %v557 = vpack.c.b16 %v530, %v529
    %v558 = vpack.c.b16 %v532, %v531
    %v559 = vpack.c.b16 %v534, %v533
    %v560 = vpack.c.b16 %v536, %v535
    %v561 = vpack.c.b16 %v538, %v537
    %v562 = vpack.c.b16 %v540, %v539
    %v563 = vpack.c.b16 %v542, %v541
    %v564 = vpack.c.b16 %v544, %v543
    %v565 = vpack.c.b16 %v546, %v545
    %v566 = vpack.c.b16 %v548, %v547
    %v567 = vpack.c.b16 %v550, %v549
    %v568 = vpack.c.b16 %v552, %v551
    %585 = vmatprep.subr.bf16.mxu0 0
    %586 = vmatpush1.bf16.msra.mxu0 %v553
    %587 = vmatprep.subr.bf16.mxu0 0
    %588 = vmatpush1.bf16.msra.mxu0 %v554
    %589 = vmatprep.subr.bf16.mxu0 0
    %590 = vmatpush1.bf16.msra.mxu0 %v555
    %591 = vmatprep.subr.bf16.mxu0 0
    %592 = vmatpush1.bf16.msra.mxu0 %v556
    %593 = vmatprep.subr.bf16.mxu0 0
    %594 = vmatpush1.bf16.msra.mxu0 %v557
    %595 = vmatprep.subr.bf16.mxu0 0
    %596 = vmatpush1.bf16.msra.mxu0 %v558
    %597 = vmatprep.subr.bf16.mxu0 0
    %598 = vmatpush1.bf16.msra.mxu0 %v559
    %599 = vmatprep.subr.bf16.mxu0 0
    %600 = vmatpush1.bf16.msra.mxu0 %v560
    %601 = vmatprep.subr.bf16.mxu0 0
    %602 = vmatpush1.bf16.msra.mxu0 %v561
    %603 = vmatprep.subr.bf16.mxu0 0
    %604 = vmatpush1.bf16.msra.mxu0 %v562
    %605 = vmatprep.subr.bf16.mxu0 0
    %606 = vmatpush1.bf16.msra.mxu0 %v563
    %607 = vmatprep.subr.bf16.mxu0 0
    %608 = vmatpush1.bf16.msra.mxu0 %v564
    %609 = vmatprep.subr.bf16.mxu0 0
    %610 = vmatpush1.bf16.msra.mxu0 %v565
    %611 = vmatprep.subr.bf16.mxu0 0
    %612 = vmatpush1.bf16.msra.mxu0 %v566
    %613 = vmatprep.subr.bf16.mxu0 0
    %614 = vmatpush1.bf16.msra.mxu0 %v567
    %615 = vmatprep.subr.bf16.mxu0 0
    %616 = vmatpush1.bf16.msra.mxu0 %v568
    %617 = vmatprep.mubr.bf16.mxu0 %v438
    %618 = vmatmul.mubr.bf16.gmra.mrb[0].mxu0 %v437
    %v619 = vpop.f32.mrb[0].mxu0
    %v620 = vadd.f32 0.0, %v619
    %v621 = vpop.f32.mrb[0].mxu0
    %v622 = vpop.f32.mrb[0].mxu0
    %v623 = vadd.f32 0.0, %v622
    %v624 = vpop.f32.mrb[0].mxu0
    %625 = vmatprep.mubr.bf16.mxu0 %v440
    %626 = vmatmul.mubr.bf16.gmra.mrb[0].mxu0 %v439
    %v627 = vpop.f32.mrb[0].mxu0
    %v628 = vadd.f32 0.0, %v627
    %v629 = vpop.f32.mrb[0].mxu0
    %v630 = vpop.f32.mrb[0].mxu0
    %v631 = vadd.f32 0.0, %v630
    %v632 = vpop.f32.mrb[0].mxu0
    %633 = vmatprep.mubr.bf16.mxu0 %v442
    %634 = vmatmul.mubr.bf16.gmra.mrb[0].mxu0 %v441
    %v635 = vpop.f32.mrb[0].mxu0
    %v636 = vadd.f32 0.0, %v635
    %v637 = vpop.f32.mrb[0].mxu0
    %v638 = vpop.f32.mrb[0].mxu0
    %v639 = vadd.f32 0.0, %v638
    %v640 = vpop.f32.mrb[0].mxu0
    %641 = vmatprep.mubr.bf16.mxu0 %v444
    %642 = vmatmul.mubr.bf16.gmra.mrb[0].mxu0 %v443
    %v643 = vpop.f32.mrb[0].mxu0
    %v644 = vadd.f32 0.0, %v643
    %v645 = vpop.f32.mrb[0].mxu0
    %v646 = vpop.f32.mrb[0].mxu0
    %v647 = vadd.f32 0.0, %v646
    %v648 = vpop.f32.mrb[0].mxu0
    %649 = vmatprep.mubr.bf16.mxu0 %v446
    %650 = vmatmul.mubr.bf16.gmra.mrb[0].mxu0 %v445
    %v651 = vpop.f32.mrb[0].mxu0
    %v652 = vadd.f32 0.0, %v651
    %v653 = vpop.f32.mrb[0].mxu0
    %v654 = vpop.f32.mrb[0].mxu0
    %v655 = vadd.f32 0.0, %v654
    %v656 = vpop.f32.mrb[0].mxu0
    %657 = vmatprep.mubr.bf16.mxu0 %v448
    %658 = vmatmul.mubr.bf16.gmra.mrb[0].mxu0 %v447
    %v659 = vpop.f32.mrb[0].mxu0
    %v660 = vadd.f32 0.0, %v659
    %v661 = vpop.f32.mrb[0].mxu0
    %v662 = vpop.f32.mrb[0].mxu0
    %v663 = vadd.f32 0.0, %v662
    %v664 = vpop.f32.mrb[0].mxu0
    %665 = vmatprep.mubr.bf16.mxu0 %v450
    %666 = vmatmul.mubr.bf16.gmra.mrb[0].mxu0 %v449
    %v667 = vpop.f32.mrb[0].mxu0
    %v668 = vadd.f32 0.0, %v667
    %v669 = vpop.f32.mrb[0].mxu0
    %v670 = vpop.f32.mrb[0].mxu0
    %v671 = vadd.f32 0.0, %v670
    %v672 = vpop.f32.mrb[0].mxu0
    %673 = vmatprep.mubr.bf16.mxu0 %v452
    %674 = vmatmul.mubr.bf16.gmra.mrb[0].mxu0 %v451
    %v675 = vpop.f32.mrb[0].mxu0
    %v676 = vadd.f32 0.0, %v675
    %v677 = vpop.f32.mrb[0].mxu0
    %v678 = vpop.f32.mrb[0].mxu0
    %v679 = vadd.f32 0.0, %v678
    %v680 = vpop.f32.mrb[0].mxu0
    %681 = vmatprep.mubr.bf16.mxu0 %v454
    %682 = vmatmul.mubr.bf16.gmra.mrb[0].mxu0 %v453
    %v683 = vpop.f32.mrb[0].mxu0
    %v684 = vadd.f32 0.0, %v683
    %v685 = vpop.f32.mrb[0].mxu0
    %v686 = vpop.f32.mrb[0].mxu0
    %v687 = vadd.f32 0.0, %v686
    %v688 = vpop.f32.mrb[0].mxu0
    %689 = vmatprep.mubr.bf16.mxu0 %v456
    %690 = vmatmul.mubr.bf16.gmra.mrb[0].mxu0 %v455
    %v691 = vpop.f32.mrb[0].mxu0
    %v692 = vadd.f32 0.0, %v691
    %v693 = vpop.f32.mrb[0].mxu0
    %v694 = vpop.f32.mrb[0].mxu0
    %v695 = vadd.f32 0.0, %v694
    %v696 = vpop.f32.mrb[0].mxu0
    %697 = vdwg.mxu0
    %v698 = vadd.f32 %v86, %v620
    %v699 = vadd.f32 %v87, %v623
    %v700 = vadd.f32 %v88, %v628
    %v701 = vadd.f32 %v89, %v631
    %v702 = vadd.f32 %v90, %v636
    %v703 = vadd.f32 %v91, %v639
    %v704 = vadd.f32 %v92, %v644
    %v705 = vadd.f32 %v93, %v647
    %v706 = vadd.f32 %v94, %v652
    %v707 = vadd.f32 %v95, %v655
    %v708 = vadd.f32 %v96, %v660
    %v709 = vadd.f32 %v97, %v663
    %v710 = vadd.f32 %v98, %v668
    %v711 = vadd.f32 %v99, %v671
    %v712 = vadd.f32 %v100, %v676
    %v713 = vadd.f32 %v101, %v679
    %v714 = vadd.f32 %v102, %v684
    %v715 = vadd.f32 %v103, %v687
    %v716 = vadd.f32 %v104, %v692
    %v717 = vadd.f32 %v105, %v695
    %v718 = vld [vmem:[%s5] sm:$0x1]
    %v720 = vlaneseq
    %v721 = vshrl.u32 %v720, 7
    %v722 = vsub.s32 0, %v721
    %v723 = vrot.slane %v718, %v722
    %v725 = vadd.f32 %v698, %v723
    %v726 = vadd.f32 %v699, %v723
    %v727 = vadd.f32 %v700, %v723
    %v728 = vadd.f32 %v701, %v723
    %v729 = vadd.f32 %v702, %v723
    %v730 = vadd.f32 %v703, %v723
    %v731 = vadd.f32 %v704, %v723
    %v732 = vadd.f32 %v705, %v723
    %v733 = vadd.f32 %v706, %v723
    %v734 = vadd.f32 %v707, %v723
    %v735 = vadd.f32 %v708, %v723
    %v736 = vadd.f32 %v709, %v723
    %v737 = vadd.f32 %v710, %v723
    %v738 = vadd.f32 %v711, %v723
    %v739 = vadd.f32 %v712, %v723
    %v740 = vadd.f32 %v713, %v723
    %v741 = vadd.f32 %v714, %v723
    %v742 = vadd.f32 %v715, %v723
    %v743 = vadd.f32 %v716, %v723
    %v744 = vadd.f32 %v717, %v723
    %v745 = vld [vmem:[%s6] sm:$0x1]
    %v746 = vld [vmem:[%s7] sm:$0x1]
    %747 = vadd.xlane.f32.xlu0 %v725
    %v748 = vpop.xlane.xlu0 %747
    %749 = vadd.xlane.f32.xlu0 %v726
    %v750 = vpop.xlane.xlu0 %749
    %751 = vadd.xlane.f32.xlu0 %v727
    %v752 = vpop.xlane.xlu0 %751
    %753 = vadd.xlane.f32.xlu0 %v728
    %v754 = vpop.xlane.xlu0 %753
    %755 = vadd.xlane.f32.xlu0 %v729
    %v756 = vpop.xlane.xlu0 %755
    %757 = vadd.xlane.f32.xlu0 %v730
    %v758 = vpop.xlane.xlu0 %757
    %759 = vadd.xlane.f32.xlu0 %v731
    %v760 = vpop.xlane.xlu0 %759
    %761 = vadd.xlane.f32.xlu0 %v732
    %v762 = vpop.xlane.xlu0 %761
    %763 = vadd.xlane.f32.xlu0 %v733
    %v764 = vpop.xlane.xlu0 %763
    %765 = vadd.xlane.f32.xlu0 %v734
    %v766 = vpop.xlane.xlu0 %765
    %767 = vadd.xlane.f32.xlu0 %v735
    %v768 = vpop.xlane.xlu0 %767
    %769 = vadd.xlane.f32.xlu0 %v736
    %v770 = vpop.xlane.xlu0 %769
    %771 = vadd.xlane.f32.xlu0 %v737
    %v772 = vpop.xlane.xlu0 %771
    %773 = vadd.xlane.f32.xlu0 %v738
    %v774 = vpop.xlane.xlu0 %773
    %775 = vadd.xlane.f32.xlu0 %v739
    %v776 = vpop.xlane.xlu0 %775
    %777 = vadd.xlane.f32.xlu0 %v740
    %v778 = vpop.xlane.xlu0 %777
    %779 = vadd.xlane.f32.xlu0 %v741
    %v780 = vpop.xlane.xlu0 %779
    %781 = vadd.xlane.f32.xlu0 %v742
    %v782 = vpop.xlane.xlu0 %781
    %783 = vadd.xlane.f32.xlu0 %v743
    %v784 = vpop.xlane.xlu0 %783
    %785 = vadd.xlane.f32.xlu0 %v744
    %v786 = vpop.xlane.xlu0 %785
    %v787 = vrcp.pop 128.0
    %v788 = vmul.f32 %v748, %v787
    %v789 = vmul.f32 %v750, %v787
    %v790 = vmul.f32 %v752, %v787
    %v791 = vmul.f32 %v754, %v787
    %v792 = vmul.f32 %v756, %v787
    %v793 = vmul.f32 %v758, %v787
    %v794 = vmul.f32 %v760, %v787
    %v795 = vmul.f32 %v762, %v787
    %v796 = vmul.f32 %v764, %v787
    %v797 = vmul.f32 %v766, %v787
    %v798 = vmul.f32 %v768, %v787
    %v799 = vmul.f32 %v770, %v787
    %v800 = vmul.f32 %v772, %v787
    %v801 = vmul.f32 %v774, %v787
    %v802 = vmul.f32 %v776, %v787
    %v803 = vmul.f32 %v778, %v787
    %v804 = vmul.f32 %v780, %v787
    %v805 = vmul.f32 %v782, %v787
    %v806 = vmul.f32 %v784, %v787
    %v807 = vmul.f32 %v786, %v787
    %v808 = vsub.f32 %v725, %v788
    %v809 = vsub.f32 %v726, %v789
    %v810 = vsub.f32 %v727, %v790
    %v811 = vsub.f32 %v728, %v791
    %v812 = vsub.f32 %v729, %v792
    %v813 = vsub.f32 %v730, %v793
    %v814 = vsub.f32 %v731, %v794
    %v815 = vsub.f32 %v732, %v795
    %v816 = vsub.f32 %v733, %v796
    %v817 = vsub.f32 %v734, %v797
    %v818 = vsub.f32 %v735, %v798
    %v819 = vsub.f32 %v736, %v799
    %v820 = vsub.f32 %v737, %v800
    %v821 = vsub.f32 %v738, %v801
    %v822 = vsub.f32 %v739, %v802
    %v823 = vsub.f32 %v740, %v803
    %v824 = vsub.f32 %v741, %v804
    %v825 = vsub.f32 %v742, %v805
    %v826 = vsub.f32 %v743, %v806
    %v827 = vsub.f32 %v744, %v807
    %v828 = vmul.f32 %v808, %v808
    %v829 = vmul.f32 %v809, %v809
    %v830 = vmul.f32 %v810, %v810
    %v831 = vmul.f32 %v811, %v811
    %v832 = vmul.f32 %v812, %v812
    %v833 = vmul.f32 %v813, %v813
    %v834 = vmul.f32 %v814, %v814
    %v835 = vmul.f32 %v815, %v815
    %v836 = vmul.f32 %v816, %v816
    %v837 = vmul.f32 %v817, %v817
    %v838 = vmul.f32 %v818, %v818
    %v839 = vmul.f32 %v819, %v819
    %v840 = vmul.f32 %v820, %v820
    %v841 = vmul.f32 %v821, %v821
    %v842 = vmul.f32 %v822, %v822
    %v843 = vmul.f32 %v823, %v823
    %v844 = vmul.f32 %v824, %v824
    %v845 = vmul.f32 %v825, %v825
    %v846 = vmul.f32 %v826, %v826
    %v847 = vmul.f32 %v827, %v827
    %848 = vadd.xlane.f32.xlu0 %v828
    %v849 = vpop.xlane.xlu0 %848
    %850 = vadd.xlane.f32.xlu0 %v829
    %v851 = vpop.xlane.xlu0 %850
    %852 = vadd.xlane.f32.xlu0 %v830
    %v853 = vpop.xlane.xlu0 %852
    %854 = vadd.xlane.f32.xlu0 %v831
    %v855 = vpop.xlane.xlu0 %854
    %856 = vadd.xlane.f32.xlu0 %v832
    %v857 = vpop.xlane.xlu0 %856
    %858 = vadd.xlane.f32.xlu0 %v833
    %v859 = vpop.xlane.xlu0 %858
    %860 = vadd.xlane.f32.xlu0 %v834
    %v861 = vpop.xlane.xlu0 %860
    %862 = vadd.xlane.f32.xlu0 %v835
    %v863 = vpop.xlane.xlu0 %862
    %864 = vadd.xlane.f32.xlu0 %v836
    %v865 = vpop.xlane.xlu0 %864
    %866 = vadd.xlane.f32.xlu0 %v837
    %v867 = vpop.xlane.xlu0 %866
    %868 = vadd.xlane.f32.xlu0 %v838
    %v869 = vpop.xlane.xlu0 %868
    %870 = vadd.xlane.f32.xlu0 %v839
    %v871 = vpop.xlane.xlu0 %870
    %872 = vadd.xlane.f32.xlu0 %v840
    %v873 = vpop.xlane.xlu0 %872
    %874 = vadd.xlane.f32.xlu0 %v841
    %v875 = vpop.xlane.xlu0 %874
    %876 = vadd.xlane.f32.xlu0 %v842
    %v877 = vpop.xlane.xlu0 %876
    %878 = vadd.xlane.f32.xlu0 %v843
    %v879 = vpop.xlane.xlu0 %878
    %880 = vadd.xlane.f32.xlu0 %v844
    %v881 = vpop.xlane.xlu0 %880
    %882 = vadd.xlane.f32.xlu0 %v845
    %v883 = vpop.xlane.xlu0 %882
    %884 = vadd.xlane.f32.xlu0 %v846
    %v885 = vpop.xlane.xlu0 %884
    %886 = vadd.xlane.f32.xlu0 %v847
    %v887 = vpop.xlane.xlu0 %886
    %v888 = vmul.f32 %v849, %v787
    %v889 = vmul.f32 %v851, %v787
    %v890 = vmul.f32 %v853, %v787
    %v891 = vmul.f32 %v855, %v787
    %v892 = vmul.f32 %v857, %v787
    %v893 = vmul.f32 %v859, %v787
    %v894 = vmul.f32 %v861, %v787
    %v895 = vmul.f32 %v863, %v787
    %v896 = vmul.f32 %v865, %v787
    %v897 = vmul.f32 %v867, %v787
    %v898 = vmul.f32 %v869, %v787
    %v899 = vmul.f32 %v871, %v787
    %v900 = vmul.f32 %v873, %v787
    %v901 = vmul.f32 %v875, %v787
    %v902 = vmul.f32 %v877, %v787
    %v903 = vmul.f32 %v879, %v787
    %v904 = vmul.f32 %v881, %v787
    %v905 = vmul.f32 %v883, %v787
    %v906 = vmul.f32 %v885, %v787
    %v907 = vmul.f32 %v887, %v787
    %v908 = vadd.f32 %v888, 1e-05
    %v909 = vadd.f32 %v889, 1e-05
    %v910 = vadd.f32 %v890, 1e-05
    %v911 = vadd.f32 %v891, 1e-05
    %v912 = vadd.f32 %v892, 1e-05
    %v913 = vadd.f32 %v893, 1e-05
    %v914 = vadd.f32 %v894, 1e-05
    %v915 = vadd.f32 %v895, 1e-05
    %v916 = vadd.f32 %v896, 1e-05
    %v917 = vadd.f32 %v897, 1e-05
    %v918 = vadd.f32 %v898, 1e-05
    %v919 = vadd.f32 %v899, 1e-05
    %v920 = vadd.f32 %v900, 1e-05
    %v921 = vadd.f32 %v901, 1e-05
    %v922 = vadd.f32 %v902, 1e-05
    %v923 = vadd.f32 %v903, 1e-05
    %v924 = vadd.f32 %v904, 1e-05
    %v925 = vadd.f32 %v905, 1e-05
    %v926 = vadd.f32 %v906, 1e-05
    %v927 = vadd.f32 %v907, 1e-05
    %v928 = vrsqrt.pop %v908
    %v929 = vrsqrt.pop %v909
    %v930 = vrsqrt.pop %v910
    %v931 = vrsqrt.pop %v911
    %v932 = vrsqrt.pop %v912
    %v933 = vrsqrt.pop %v913
    %v934 = vrsqrt.pop %v914
    %v935 = vrsqrt.pop %v915
    %v936 = vrsqrt.pop %v916
    %v937 = vrsqrt.pop %v917
    %v938 = vrsqrt.pop %v918
    %v939 = vrsqrt.pop %v919
    %v940 = vrsqrt.pop %v920
    %v941 = vrsqrt.pop %v921
    %v942 = vrsqrt.pop %v922
    %v943 = vrsqrt.pop %v923
    %v944 = vrsqrt.pop %v924
    %v945 = vrsqrt.pop %v925
    %v946 = vrsqrt.pop %v926
    %v947 = vrsqrt.pop %v927
    %v948 = vmul.f32 %v808, %v928
    %v949 = vmul.f32 %v809, %v929
    %v950 = vmul.f32 %v810, %v930
    %v951 = vmul.f32 %v811, %v931
    %v952 = vmul.f32 %v812, %v932
    %v953 = vmul.f32 %v813, %v933
    %v954 = vmul.f32 %v814, %v934
    %v955 = vmul.f32 %v815, %v935
    %v956 = vmul.f32 %v816, %v936
    %v957 = vmul.f32 %v817, %v937
    %v958 = vmul.f32 %v818, %v938
    %v959 = vmul.f32 %v819, %v939
    %v960 = vmul.f32 %v820, %v940
    %v961 = vmul.f32 %v821, %v941
    %v962 = vmul.f32 %v822, %v942
    %v963 = vmul.f32 %v823, %v943
    %v964 = vmul.f32 %v824, %v944
    %v965 = vmul.f32 %v825, %v945
    %v966 = vmul.f32 %v826, %v946
    %v967 = vmul.f32 %v827, %v947
    %v969 = vlaneseq
    %v970 = vshrl.u32 %v969, 7
    %v971 = vsub.s32 0, %v970
    %v972 = vrot.slane %v745, %v971
    %v974 = vmul.f32 %v948, %v972
    %v975 = vmul.f32 %v949, %v972
    %v976 = vmul.f32 %v950, %v972
    %v977 = vmul.f32 %v951, %v972
    %v978 = vmul.f32 %v952, %v972
    %v979 = vmul.f32 %v953, %v972
    %v980 = vmul.f32 %v954, %v972
    %v981 = vmul.f32 %v955, %v972
    %v982 = vmul.f32 %v956, %v972
    %v983 = vmul.f32 %v957, %v972
    %v984 = vmul.f32 %v958, %v972
    %v985 = vmul.f32 %v959, %v972
    %v986 = vmul.f32 %v960, %v972
    %v987 = vmul.f32 %v961, %v972
    %v988 = vmul.f32 %v962, %v972
    %v989 = vmul.f32 %v963, %v972
    %v990 = vmul.f32 %v964, %v972
    %v991 = vmul.f32 %v965, %v972
    %v992 = vmul.f32 %v966, %v972
    %v993 = vmul.f32 %v967, %v972
    %v995 = vlaneseq
    %v996 = vshrl.u32 %v995, 7
    %v997 = vsub.s32 0, %v996
    %v998 = vrot.slane %v746, %v997
    %v1000 = vadd.f32 %v974, %v998
    %v1001 = vadd.f32 %v975, %v998
    %v1002 = vadd.f32 %v976, %v998
    %v1003 = vadd.f32 %v977, %v998
    %v1004 = vadd.f32 %v978, %v998
    %v1005 = vadd.f32 %v979, %v998
    %v1006 = vadd.f32 %v980, %v998
    %v1007 = vadd.f32 %v981, %v998
    %v1008 = vadd.f32 %v982, %v998
    %v1009 = vadd.f32 %v983, %v998
    %v1010 = vadd.f32 %v984, %v998
    %v1011 = vadd.f32 %v985, %v998
    %v1012 = vadd.f32 %v986, %v998
    %v1013 = vadd.f32 %v987, %v998
    %v1014 = vadd.f32 %v988, %v998
    %v1015 = vadd.f32 %v989, %v998
    %v1016 = vadd.f32 %v990, %v998
    %v1017 = vadd.f32 %v991, %v998
    %v1018 = vadd.f32 %v992, %v998
    %v1019 = vadd.f32 %v993, %v998
    %v1020 = vadd.f32 %v1000, %v106
    %v1021 = vadd.f32 %v1001, %v107
    %v1022 = vadd.f32 %v1002, %v108
    %v1023 = vadd.f32 %v1003, %v109
    %v1024 = vadd.f32 %v1004, %v110
    %v1025 = vadd.f32 %v1005, %v111
    %v1026 = vadd.f32 %v1006, %v112
    %v1027 = vadd.f32 %v1007, %v113
    %v1028 = vadd.f32 %v1008, %v114
    %v1029 = vadd.f32 %v1009, %v115
    %v1030 = vadd.f32 %v1010, %v116
    %v1031 = vadd.f32 %v1011, %v117
    %v1032 = vadd.f32 %v1012, %v118
    %v1033 = vadd.f32 %v1013, %v119
    %v1034 = vadd.f32 %v1014, %v120
    %v1035 = vadd.f32 %v1015, %v121
    %v1036 = vadd.f32 %v1016, %v122
    %v1037 = vadd.f32 %v1017, %v123
    %v1038 = vadd.f32 %v1018, %v124
    %v1039 = vadd.f32 %v1019, %v125
    %v1040 = vpack.c.bf16 %v1021, %v1020
    %v1041 = vpack.c.bf16 %v1023, %v1022
    %v1042 = vpack.c.bf16 %v1025, %v1024
    %v1043 = vpack.c.bf16 %v1027, %v1026
    %v1044 = vpack.c.bf16 %v1029, %v1028
    %v1045 = vpack.c.bf16 %v1031, %v1030
    %v1046 = vpack.c.bf16 %v1033, %v1032
    %v1047 = vpack.c.bf16 %v1035, %v1034
    %v1048 = vpack.c.bf16 %v1037, %v1036
    %v1049 = vpack.c.bf16 %v1039, %v1038
    %s1050 = scalar_lea.vmem [#allocation7], 128
    %v1051 = vld [vmem:[%s1050] sm:$0xff]
    %v1052 = vld [vmem:[%s1050 + $0x8] sm:$0xff]
    %v1053 = vld [vmem:[%s1050 + $0x10] sm:$0xff]
    %v1054 = vld [vmem:[%s1050 + $0x18] sm:$0xff]
    %v1055 = vld [vmem:[%s1050 + $0x20] sm:$0xff]
    %v1056 = vld [vmem:[%s1050 + $0x28] sm:$0xff]
    %v1057 = vld [vmem:[%s1050 + $0x30] sm:$0xff]
    %v1058 = vld [vmem:[%s1050 + $0x38] sm:$0xff]
    %v1059 = vld [vmem:[%s1050 + $0x40] sm:$0xff]
    %v1060 = vld [vmem:[%s1050 + $0x48] sm:$0xff]
    %v1061 = vld [vmem:[%s1050 + $0x50] sm:$0xff]
    %v1062 = vld [vmem:[%s1050 + $0x58] sm:$0xff]
    %v1063 = vld [vmem:[%s1050 + $0x60] sm:$0xff]
    %v1064 = vld [vmem:[%s1050 + $0x68] sm:$0xff]
    %v1065 = vld [vmem:[%s1050 + $0x70] sm:$0xff]
    %v1066 = vld [vmem:[%s1050 + $0x78] sm:$0xff]
    %s1067 = scalar_lea.vmem %s3, 2
    %v1068 = vld [vmem:[%s1067] sm:$0x3]
    %v1070 = vlaneseq
    %v1071 = vshrl.u32 %v1070, 7
    %v1072 = vsub.s32 0, %v1071
    %v1073 = vrot.slane %v1068, %v1072
    %v1074 = vlaneseq
    %v1075 = vshrl.u32 %v1074, 7
    %v1076 = vsub.s32 1, %v1075
    %v1077 = vrot.slane %v1068, %v1076
    %v1096 = vunpack.c.l.b16 %v1051
    %v1097 = vunpack.c.h.b16 %v1051
    %v1098 = vunpack.c.l.b16 %v1052
    %v1099 = vunpack.c.h.b16 %v1052
    %v1100 = vunpack.c.l.b16 %v1053
    %v1101 = vunpack.c.h.b16 %v1053
    %v1102 = vunpack.c.l.b16 %v1054
    %v1103 = vunpack.c.h.b16 %v1054
    %v1104 = vunpack.c.l.b16 %v1055
    %v1105 = vunpack.c.h.b16 %v1055
    %v1106 = vunpack.c.l.b16 %v1056
    %v1107 = vunpack.c.h.b16 %v1056
    %v1108 = vunpack.c.l.b16 %v1057
    %v1109 = vunpack.c.h.b16 %v1057
    %v1110 = vunpack.c.l.b16 %v1058
    %v1111 = vunpack.c.h.b16 %v1058
    %v1112 = vunpack.c.l.b16 %v1059
    %v1113 = vunpack.c.h.b16 %v1059
    %v1114 = vunpack.c.l.b16 %v1060
    %v1115 = vunpack.c.h.b16 %v1060
    %v1116 = vunpack.c.l.b16 %v1061
    %v1117 = vunpack.c.h.b16 %v1061
    %v1118 = vunpack.c.l.b16 %v1062
    %v1119 = vunpack.c.h.b16 %v1062
    %v1120 = vunpack.c.l.b16 %v1063
    %v1121 = vunpack.c.h.b16 %v1063
    %v1122 = vunpack.c.l.b16 %v1064
    %v1123 = vunpack.c.h.b16 %v1064
    %v1124 = vunpack.c.l.b16 %v1065
    %v1125 = vunpack.c.h.b16 %v1065
    %v1126 = vunpack.c.l.b16 %v1066
    %v1127 = vunpack.c.h.b16 %v1066
    %v1128 = vpack.c.b16 %v1098, %v1096
    %v1129 = vpack.c.b16 %v1099, %v1097
    %v1130 = vpack.c.b16 %v1102, %v1100
    %v1131 = vpack.c.b16 %v1103, %v1101
    %v1132 = vpack.c.b16 %v1106, %v1104
    %v1133 = vpack.c.b16 %v1107, %v1105
    %v1134 = vpack.c.b16 %v1110, %v1108
    %v1135 = vpack.c.b16 %v1111, %v1109
    %v1136 = vpack.c.b16 %v1114, %v1112
    %v1137 = vpack.c.b16 %v1115, %v1113
    %v1138 = vpack.c.b16 %v1118, %v1116
    %v1139 = vpack.c.b16 %v1119, %v1117
    %v1140 = vpack.c.b16 %v1122, %v1120
    %v1141 = vpack.c.b16 %v1123, %v1121
    %v1142 = vpack.c.b16 %v1126, %v1124
    %v1143 = vpack.c.b16 %v1127, %v1125
    %1160 = vmatprep.subr.bf16.mxu0 %v1129
    %1161 = vmatpush1.bf16.msra.mxu0 %v1128
    %1162 = vmatprep.subr.bf16.mxu0 %v1131
    %1163 = vmatpush1.bf16.msra.mxu0 %v1130
    %1164 = vmatprep.subr.bf16.mxu0 %v1133
    %1165 = vmatpush1.bf16.msra.mxu0 %v1132
    %1166 = vmatprep.subr.bf16.mxu0 %v1135
    %1167 = vmatpush1.bf16.msra.mxu0 %v1134
    %1168 = vmatprep.subr.bf16.mxu0 %v1137
    %1169 = vmatpush1.bf16.msra.mxu0 %v1136
    %1170 = vmatprep.subr.bf16.mxu0 %v1139
    %1171 = vmatpush1.bf16.msra.mxu0 %v1138
    %1172 = vmatprep.subr.bf16.mxu0 %v1141
    %1173 = vmatpush1.bf16.msra.mxu0 %v1140
    %1174 = vmatprep.subr.bf16.mxu0 %v1143
    %1175 = vmatpush1.bf16.msra.mxu0 %v1142
    %1176 = vmatprep.subr.bf16.mxu0 0
    %1177 = vmatpush1.bf16.msra.mxu0 0
    %1178 = vmatprep.subr.bf16.mxu0 0
    %1179 = vmatpush1.bf16.msra.mxu0 0
    %1180 = vmatprep.subr.bf16.mxu0 0
    %1181 = vmatpush1.bf16.msra.mxu0 0
    %1182 = vmatprep.subr.bf16.mxu0 0
    %1183 = vmatpush1.bf16.msra.mxu0 0
    %1184 = vmatprep.subr.bf16.mxu0 0
    %1185 = vmatpush1.bf16.msra.mxu0 0
    %1186 = vmatprep.subr.bf16.mxu0 0
    %1187 = vmatpush1.bf16.msra.mxu0 0
    %1188 = vmatprep.subr.bf16.mxu0 0
    %1189 = vmatpush1.bf16.msra.mxu0 0
    %1190 = vmatprep.subr.bf16.mxu0 0
    %1191 = vmatpush1.bf16.msra.mxu0 0
    %1192 = vmatprep.mubr.bf16.mxu0 0
    %1193 = vmatmul.mubr.bf16.gmra.mrb[0].mxu0 %v1040
    %v1194 = vpop.f32.mrb[0].mxu0
    %v1195 = vadd.f32 %v1073, %v1194
    %v1196 = vpop.f32.mrb[0].mxu0
    %v1197 = vadd.f32 %v1077, %v1196
    %v1198 = vpop.f32.mrb[0].mxu0
    %v1199 = vadd.f32 %v1073, %v1198
    %v1200 = vpop.f32.mrb[0].mxu0
    %v1201 = vadd.f32 %v1077, %v1200
    %1202 = vmatprep.mubr.bf16.mxu0 0
    %1203 = vmatmul.mubr.bf16.gmra.mrb[0].mxu0 %v1041
    %v1204 = vpop.f32.mrb[0].mxu0
    %v1205 = vadd.f32 %v1073, %v1204
    %v1206 = vpop.f32.mrb[0].mxu0
    %v1207 = vadd.f32 %v1077, %v1206
    %v1208 = vpop.f32.mrb[0].mxu0
    %v1209 = vadd.f32 %v1073, %v1208
    %v1210 = vpop.f32.mrb[0].mxu0
    %v1211 = vadd.f32 %v1077, %v1210
    %1212 = vmatprep.mubr.bf16.mxu0 0
    %1213 = vmatmul.mubr.bf16.gmra.mrb[0].mxu0 %v1042
    %v1214 = vpop.f32.mrb[0].mxu0
    %v1215 = vadd.f32 %v1073, %v1214
    %v1216 = vpop.f32.mrb[0].mxu0
    %v1217 = vadd.f32 %v1077, %v1216
    %v1218 = vpop.f32.mrb[0].mxu0
    %v1219 = vadd.f32 %v1073, %v1218
    %v1220 = vpop.f32.mrb[0].mxu0
    %v1221 = vadd.f32 %v1077, %v1220
    %1222 = vmatprep.mubr.bf16.mxu0 0
    %1223 = vmatmul.mubr.bf16.gmra.mrb[0].mxu0 %v1043
    %v1224 = vpop.f32.mrb[0].mxu0
    %v1225 = vadd.f32 %v1073, %v1224
    %v1226 = vpop.f32.mrb[0].mxu0
    %v1227 = vadd.f32 %v1077, %v1226
    %v1228 = vpop.f32.mrb[0].mxu0
    %v1229 = vadd.f32 %v1073, %v1228
    %v1230 = vpop.f32.mrb[0].mxu0
    %v1231 = vadd.f32 %v1077, %v1230
    %1232 = vmatprep.mubr.bf16.mxu0 0
    %1233 = vmatmul.mubr.bf16.gmra.mrb[0].mxu0 %v1044
    %v1234 = vpop.f32.mrb[0].mxu0
    %v1235 = vadd.f32 %v1073, %v1234
    %v1236 = vpop.f32.mrb[0].mxu0
    %v1237 = vadd.f32 %v1077, %v1236
    %v1238 = vpop.f32.mrb[0].mxu0
    %v1239 = vadd.f32 %v1073, %v1238
    %v1240 = vpop.f32.mrb[0].mxu0
    %v1241 = vadd.f32 %v1077, %v1240
    %1242 = vmatprep.mubr.bf16.mxu0 0
    %1243 = vmatmul.mubr.bf16.gmra.mrb[0].mxu0 %v1045
    %v1244 = vpop.f32.mrb[0].mxu0
    %v1245 = vadd.f32 %v1073, %v1244
    %v1246 = vpop.f32.mrb[0].mxu0
    %v1247 = vadd.f32 %v1077, %v1246
    %v1248 = vpop.f32.mrb[0].mxu0
    %v1249 = vadd.f32 %v1073, %v1248
    %v1250 = vpop.f32.mrb[0].mxu0
    %v1251 = vadd.f32 %v1077, %v1250
    %1252 = vmatprep.mubr.bf16.mxu0 0
    %1253 = vmatmul.mubr.bf16.gmra.mrb[0].mxu0 %v1046
    %v1254 = vpop.f32.mrb[0].mxu0
    %v1255 = vadd.f32 %v1073, %v1254
    %v1256 = vpop.f32.mrb[0].mxu0
    %v1257 = vadd.f32 %v1077, %v1256
    %v1258 = vpop.f32.mrb[0].mxu0
    %v1259 = vadd.f32 %v1073, %v1258
    %v1260 = vpop.f32.mrb[0].mxu0
    %v1261 = vadd.f32 %v1077, %v1260
    %1262 = vmatprep.mubr.bf16.mxu0 0
    %1263 = vmatmul.mubr.bf16.gmra.mrb[0].mxu0 %v1047
    %v1264 = vpop.f32.mrb[0].mxu0
    %v1265 = vadd.f32 %v1073, %v1264
    %v1266 = vpop.f32.mrb[0].mxu0
    %v1267 = vadd.f32 %v1077, %v1266
    %v1268 = vpop.f32.mrb[0].mxu0
    %v1269 = vadd.f32 %v1073, %v1268
    %v1270 = vpop.f32.mrb[0].mxu0
    %v1271 = vadd.f32 %v1077, %v1270
    %1272 = vmatprep.mubr.bf16.mxu0 0
    %1273 = vmatmul.mubr.bf16.gmra.mrb[0].mxu0 %v1048
    %v1274 = vpop.f32.mrb[0].mxu0
    %v1275 = vadd.f32 %v1073, %v1274
    %v1276 = vpop.f32.mrb[0].mxu0
    %v1277 = vadd.f32 %v1077, %v1276
    %v1278 = vpop.f32.mrb[0].mxu0
    %v1279 = vadd.f32 %v1073, %v1278
    %v1280 = vpop.f32.mrb[0].mxu0
    %v1281 = vadd.f32 %v1077, %v1280
    %1282 = vmatprep.mubr.bf16.mxu0 0
    %1283 = vmatmul.mubr.bf16.gmra.mrb[0].mxu0 %v1049
    %v1284 = vpop.f32.mrb[0].mxu0
    %v1285 = vadd.f32 %v1073, %v1284
    %v1286 = vpop.f32.mrb[0].mxu0
    %v1287 = vadd.f32 %v1077, %v1286
    %v1288 = vpop.f32.mrb[0].mxu0
    %v1289 = vadd.f32 %v1073, %v1288
    %v1290 = vpop.f32.mrb[0].mxu0
    %v1291 = vadd.f32 %v1077, %v1290
    %1292 = vdwg.mxu0
    %v1293 = vmax.f32 %v1195, 0.0
    %v1294 = vmax.f32 %v1197, 0.0
    %v1295 = vmax.f32 %v1199, 0.0
    %v1296 = vmax.f32 %v1201, 0.0
    %v1297 = vmax.f32 %v1205, 0.0
    %v1298 = vmax.f32 %v1207, 0.0
    %v1299 = vmax.f32 %v1209, 0.0
    %v1300 = vmax.f32 %v1211, 0.0
    %v1301 = vmax.f32 %v1215, 0.0
    %v1302 = vmax.f32 %v1217, 0.0
    %v1303 = vmax.f32 %v1219, 0.0
    %v1304 = vmax.f32 %v1221, 0.0
    %v1305 = vmax.f32 %v1225, 0.0
    %v1306 = vmax.f32 %v1227, 0.0
    %v1307 = vmax.f32 %v1229, 0.0
    %v1308 = vmax.f32 %v1231, 0.0
    %v1309 = vmax.f32 %v1235, 0.0
    %v1310 = vmax.f32 %v1237, 0.0
    %v1311 = vmax.f32 %v1239, 0.0
    %v1312 = vmax.f32 %v1241, 0.0
    %v1313 = vmax.f32 %v1245, 0.0
    %v1314 = vmax.f32 %v1247, 0.0
    %v1315 = vmax.f32 %v1249, 0.0
    %v1316 = vmax.f32 %v1251, 0.0
    %v1317 = vmax.f32 %v1255, 0.0
    %v1318 = vmax.f32 %v1257, 0.0
    %v1319 = vmax.f32 %v1259, 0.0
    %v1320 = vmax.f32 %v1261, 0.0
    %v1321 = vmax.f32 %v1265, 0.0
    %v1322 = vmax.f32 %v1267, 0.0
    %v1323 = vmax.f32 %v1269, 0.0
    %v1324 = vmax.f32 %v1271, 0.0
    %v1325 = vmax.f32 %v1275, 0.0
    %v1326 = vmax.f32 %v1277, 0.0
    %v1327 = vmax.f32 %v1279, 0.0
    %v1328 = vmax.f32 %v1281, 0.0
    %v1329 = vmax.f32 %v1285, 0.0
    %v1330 = vmax.f32 %v1287, 0.0
    %v1331 = vmax.f32 %v1289, 0.0
    %v1332 = vmax.f32 %v1291, 0.0
    %v1333 = vpack.c.bf16 %v1295, %v1293
    %v1334 = vpack.c.bf16 %v1296, %v1294
    %v1335 = vpack.c.bf16 %v1299, %v1297
    %v1336 = vpack.c.bf16 %v1300, %v1298
    %v1337 = vpack.c.bf16 %v1303, %v1301
    %v1338 = vpack.c.bf16 %v1304, %v1302
    %v1339 = vpack.c.bf16 %v1307, %v1305
    %v1340 = vpack.c.bf16 %v1308, %v1306
    %v1341 = vpack.c.bf16 %v1311, %v1309
    %v1342 = vpack.c.bf16 %v1312, %v1310
    %v1343 = vpack.c.bf16 %v1315, %v1313
    %v1344 = vpack.c.bf16 %v1316, %v1314
    %v1345 = vpack.c.bf16 %v1319, %v1317
    %v1346 = vpack.c.bf16 %v1320, %v1318
    %v1347 = vpack.c.bf16 %v1323, %v1321
    %v1348 = vpack.c.bf16 %v1324, %v1322
    %v1349 = vpack.c.bf16 %v1327, %v1325
    %v1350 = vpack.c.bf16 %v1328, %v1326
    %v1351 = vpack.c.bf16 %v1331, %v1329
    %v1352 = vpack.c.bf16 %v1332, %v1330
    %s1353 = scalar_lea.vmem [#allocation8], 128
    %v1354 = vld [vmem:[%s1353] sm:$0xf]
    %v1355 = vld [vmem:[%s1353 + $0x4] sm:$0xf]
    %v1356 = vld [vmem:[%s1353 + $0x8] sm:$0xf]
    %v1357 = vld [vmem:[%s1353 + $0xc] sm:$0xf]
    %v1358 = vld [vmem:[%s1353 + $0x10] sm:$0xf]
    %v1359 = vld [vmem:[%s1353 + $0x14] sm:$0xf]
    %v1360 = vld [vmem:[%s1353 + $0x18] sm:$0xf]
    %v1361 = vld [vmem:[%s1353 + $0x1c] sm:$0xf]
    %v1362 = vld [vmem:[%s1353 + $0x20] sm:$0xf]
    %v1363 = vld [vmem:[%s1353 + $0x24] sm:$0xf]
    %v1364 = vld [vmem:[%s1353 + $0x28] sm:$0xf]
    %v1365 = vld [vmem:[%s1353 + $0x2c] sm:$0xf]
    %v1366 = vld [vmem:[%s1353 + $0x30] sm:$0xf]
    %v1367 = vld [vmem:[%s1353 + $0x34] sm:$0xf]
    %v1368 = vld [vmem:[%s1353 + $0x38] sm:$0xf]
    %v1369 = vld [vmem:[%s1353 + $0x3c] sm:$0xf]
    %v1370 = vld [vmem:[%s1353 + $0x40] sm:$0xf]
    %v1371 = vld [vmem:[%s1353 + $0x44] sm:$0xf]
    %v1372 = vld [vmem:[%s1353 + $0x48] sm:$0xf]
    %v1373 = vld [vmem:[%s1353 + $0x4c] sm:$0xf]
    %v1374 = vld [vmem:[%s1353 + $0x50] sm:$0xf]
    %v1375 = vld [vmem:[%s1353 + $0x54] sm:$0xf]
    %v1376 = vld [vmem:[%s1353 + $0x58] sm:$0xf]
    %v1377 = vld [vmem:[%s1353 + $0x5c] sm:$0xf]
    %v1378 = vld [vmem:[%s1353 + $0x60] sm:$0xf]
    %v1379 = vld [vmem:[%s1353 + $0x64] sm:$0xf]
    %v1380 = vld [vmem:[%s1353 + $0x68] sm:$0xf]
    %v1381 = vld [vmem:[%s1353 + $0x6c] sm:$0xf]
    %v1382 = vld [vmem:[%s1353 + $0x70] sm:$0xf]
    %v1383 = vld [vmem:[%s1353 + $0x74] sm:$0xf]
    %v1384 = vld [vmem:[%s1353 + $0x78] sm:$0xf]
    %v1385 = vld [vmem:[%s1353 + $0x7c] sm:$0xf]
    %v1418 = vunpack.c.l.b16 %v1354
    %v1419 = vunpack.c.l.b16 %v1355
    %v1420 = vunpack.c.l.b16 %v1356
    %v1421 = vunpack.c.l.b16 %v1357
    %v1422 = vunpack.c.l.b16 %v1358
    %v1423 = vunpack.c.l.b16 %v1359
    %v1424 = vunpack.c.l.b16 %v1360
    %v1425 = vunpack.c.l.b16 %v1361
    %v1426 = vunpack.c.l.b16 %v1362
    %v1427 = vunpack.c.l.b16 %v1363
    %v1428 = vunpack.c.l.b16 %v1364
    %v1429 = vunpack.c.l.b16 %v1365
    %v1430 = vunpack.c.l.b16 %v1366
    %v1431 = vunpack.c.l.b16 %v1367
    %v1432 = vunpack.c.l.b16 %v1368
    %v1433 = vunpack.c.l.b16 %v1369
    %v1434 = vunpack.c.l.b16 %v1370
    %v1435 = vunpack.c.l.b16 %v1371
    %v1436 = vunpack.c.l.b16 %v1372
    %v1437 = vunpack.c.l.b16 %v1373
    %v1438 = vunpack.c.l.b16 %v1374
    %v1439 = vunpack.c.l.b16 %v1375
    %v1440 = vunpack.c.l.b16 %v1376
    %v1441 = vunpack.c.l.b16 %v1377
    %v1442 = vunpack.c.l.b16 %v1378
    %v1443 = vunpack.c.l.b16 %v1379
    %v1444 = vunpack.c.l.b16 %v1380
    %v1445 = vunpack.c.l.b16 %v1381
    %v1446 = vunpack.c.l.b16 %v1382
    %v1447 = vunpack.c.l.b16 %v1383
    %v1448 = vunpack.c.l.b16 %v1384
    %v1449 = vunpack.c.l.b16 %v1385
    %v1450 = vpack.c.b16 %v1419, %v1418
    %v1451 = vpack.c.b16 %v1421, %v1420
    %v1452 = vpack.c.b16 %v1423, %v1422
    %v1453 = vpack.c.b16 %v1425, %v1424
    %v1454 = vpack.c.b16 %v1427, %v1426
    %v1455 = vpack.c.b16 %v1429, %v1428
    %v1456 = vpack.c.b16 %v1431, %v1430
    %v1457 = vpack.c.b16 %v1433, %v1432
    %v1458 = vpack.c.b16 %v1435, %v1434
    %v1459 = vpack.c.b16 %v1437, %v1436
    %v1460 = vpack.c.b16 %v1439, %v1438
    %v1461 = vpack.c.b16 %v1441, %v1440
    %v1462 = vpack.c.b16 %v1443, %v1442
    %v1463 = vpack.c.b16 %v1445, %v1444
    %v1464 = vpack.c.b16 %v1447, %v1446
    %v1465 = vpack.c.b16 %v1449, %v1448
    %1482 = vmatprep.subr.bf16.mxu0 0
    %1483 = vmatpush1.bf16.msra.mxu0 %v1450
    %1484 = vmatprep.subr.bf16.mxu0 0
    %1485 = vmatpush1.bf16.msra.mxu0 %v1451
    %1486 = vmatprep.subr.bf16.mxu0 0
    %1487 = vmatpush1.bf16.msra.mxu0 %v1452
    %1488 = vmatprep.subr.bf16.mxu0 0
    %1489 = vmatpush1.bf16.msra.mxu0 %v1453
    %1490 = vmatprep.subr.bf16.mxu0 0
    %1491 = vmatpush1.bf16.msra.mxu0 %v1454
    %1492 = vmatprep.subr.bf16.mxu0 0
    %1493 = vmatpush1.bf16.msra.mxu0 %v1455
    %1494 = vmatprep.subr.bf16.mxu0 0
    %1495 = vmatpush1.bf16.msra.mxu0 %v1456
    %1496 = vmatprep.subr.bf16.mxu0 0
    %1497 = vmatpush1.bf16.msra.mxu0 %v1457
    %1498 = vmatprep.subr.bf16.mxu0 0
    %1499 = vmatpush1.bf16.msra.mxu0 %v1458
    %1500 = vmatprep.subr.bf16.mxu0 0
    %1501 = vmatpush1.bf16.msra.mxu0 %v1459
    %1502 = vmatprep.subr.bf16.mxu0 0
    %1503 = vmatpush1.bf16.msra.mxu0 %v1460
    %1504 = vmatprep.subr.bf16.mxu0 0
    %1505 = vmatpush1.bf16.msra.mxu0 %v1461
    %1506 = vmatprep.subr.bf16.mxu0 0
    %1507 = vmatpush1.bf16.msra.mxu0 %v1462
    %1508 = vmatprep.subr.bf16.mxu0 0
    %1509 = vmatpush1.bf16.msra.mxu0 %v1463
    %1510 = vmatprep.subr.bf16.mxu0 0
    %1511 = vmatpush1.bf16.msra.mxu0 %v1464
    %1512 = vmatprep.subr.bf16.mxu0 0
    %1513 = vmatpush1.bf16.msra.mxu0 %v1465
    %1514 = vmatprep.mubr.bf16.mxu0 %v1334
    %1515 = vmatmul.mubr.bf16.gmra.mrb[0].mxu0 %v1333
    %v1516 = vpop.f32.mrb[0].mxu0
    %v1517 = vadd.f32 0.0, %v1516
    %v1518 = vpop.f32.mrb[0].mxu0
    %v1519 = vpop.f32.mrb[0].mxu0
    %v1520 = vadd.f32 0.0, %v1519
    %v1521 = vpop.f32.mrb[0].mxu0
    %1522 = vmatprep.mubr.bf16.mxu0 %v1336
    %1523 = vmatmul.mubr.bf16.gmra.mrb[0].mxu0 %v1335
    %v1524 = vpop.f32.mrb[0].mxu0
    %v1525 = vadd.f32 0.0, %v1524
    %v1526 = vpop.f32.mrb[0].mxu0
    %v1527 = vpop.f32.mrb[0].mxu0
    %v1528 = vadd.f32 0.0, %v1527
    %v1529 = vpop.f32.mrb[0].mxu0
    %1530 = vmatprep.mubr.bf16.mxu0 %v1338
    %1531 = vmatmul.mubr.bf16.gmra.mrb[0].mxu0 %v1337
    %v1532 = vpop.f32.mrb[0].mxu0
    %v1533 = vadd.f32 0.0, %v1532
    %v1534 = vpop.f32.mrb[0].mxu0
    %v1535 = vpop.f32.mrb[0].mxu0
    %v1536 = vadd.f32 0.0, %v1535
    %v1537 = vpop.f32.mrb[0].mxu0
    %1538 = vmatprep.mubr.bf16.mxu0 %v1340
    %1539 = vmatmul.mubr.bf16.gmra.mrb[0].mxu0 %v1339
    %v1540 = vpop.f32.mrb[0].mxu0
    %v1541 = vadd.f32 0.0, %v1540
    %v1542 = vpop.f32.mrb[0].mxu0
    %v1543 = vpop.f32.mrb[0].mxu0
    %v1544 = vadd.f32 0.0, %v1543
    %v1545 = vpop.f32.mrb[0].mxu0
    %1546 = vmatprep.mubr.bf16.mxu0 %v1342
    %1547 = vmatmul.mubr.bf16.gmra.mrb[0].mxu0 %v1341
    %v1548 = vpop.f32.mrb[0].mxu0
    %v1549 = vadd.f32 0.0, %v1548
    %v1550 = vpop.f32.mrb[0].mxu0
    %v1551 = vpop.f32.mrb[0].mxu0
    %v1552 = vadd.f32 0.0, %v1551
    %v1553 = vpop.f32.mrb[0].mxu0
    %1554 = vmatprep.mubr.bf16.mxu0 %v1344
    %1555 = vmatmul.mubr.bf16.gmra.mrb[0].mxu0 %v1343
    %v1556 = vpop.f32.mrb[0].mxu0
    %v1557 = vadd.f32 0.0, %v1556
    %v1558 = vpop.f32.mrb[0].mxu0
    %v1559 = vpop.f32.mrb[0].mxu0
    %v1560 = vadd.f32 0.0, %v1559
    %v1561 = vpop.f32.mrb[0].mxu0
    %1562 = vmatprep.mubr.bf16.mxu0 %v1346
    %1563 = vmatmul.mubr.bf16.gmra.mrb[0].mxu0 %v1345
    %v1564 = vpop.f32.mrb[0].mxu0
    %v1565 = vadd.f32 0.0, %v1564
    %v1566 = vpop.f32.mrb[0].mxu0
    %v1567 = vpop.f32.mrb[0].mxu0
    %v1568 = vadd.f32 0.0, %v1567
    %v1569 = vpop.f32.mrb[0].mxu0
    %1570 = vmatprep.mubr.bf16.mxu0 %v1348
    %1571 = vmatmul.mubr.bf16.gmra.mrb[0].mxu0 %v1347
    %v1572 = vpop.f32.mrb[0].mxu0
    %v1573 = vadd.f32 0.0, %v1572
    %v1574 = vpop.f32.mrb[0].mxu0
    %v1575 = vpop.f32.mrb[0].mxu0
    %v1576 = vadd.f32 0.0, %v1575
    %v1577 = vpop.f32.mrb[0].mxu0
    %1578 = vmatprep.mubr.bf16.mxu0 %v1350
    %1579 = vmatmul.mubr.bf16.gmra.mrb[0].mxu0 %v1349
    %v1580 = vpop.f32.mrb[0].mxu0
    %v1581 = vadd.f32 0.0, %v1580
    %v1582 = vpop.f32.mrb[0].mxu0
    %v1583 = vpop.f32.mrb[0].mxu0
    %v1584 = vadd.f32 0.0, %v1583
    %v1585 = vpop.f32.mrb[0].mxu0
    %1586 = vmatprep.mubr.bf16.mxu0 %v1352
    %1587 = vmatmul.mubr.bf16.gmra.mrb[0].mxu0 %v1351
    %v1588 = vpop.f32.mrb[0].mxu0
    %v1589 = vadd.f32 0.0, %v1588
    %v1590 = vpop.f32.mrb[0].mxu0
    %v1591 = vpop.f32.mrb[0].mxu0
    %v1592 = vadd.f32 0.0, %v1591
    %v1593 = vpop.f32.mrb[0].mxu0
    %1594 = vdwg.mxu0
    %v1595 = vadd.f32 %v1000, %v1517
    %v1596 = vadd.f32 %v1001, %v1520
    %v1597 = vadd.f32 %v1002, %v1525
    %v1598 = vadd.f32 %v1003, %v1528
    %v1599 = vadd.f32 %v1004, %v1533
    %v1600 = vadd.f32 %v1005, %v1536
    %v1601 = vadd.f32 %v1006, %v1541
    %v1602 = vadd.f32 %v1007, %v1544
    %v1603 = vadd.f32 %v1008, %v1549
    %v1604 = vadd.f32 %v1009, %v1552
    %v1605 = vadd.f32 %v1010, %v1557
    %v1606 = vadd.f32 %v1011, %v1560
    %v1607 = vadd.f32 %v1012, %v1565
    %v1608 = vadd.f32 %v1013, %v1568
    %v1609 = vadd.f32 %v1014, %v1573
    %v1610 = vadd.f32 %v1015, %v1576
    %v1611 = vadd.f32 %v1016, %v1581
    %v1612 = vadd.f32 %v1017, %v1584
    %v1613 = vadd.f32 %v1018, %v1589
    %v1614 = vadd.f32 %v1019, %v1592
    %s1615 = scalar_lea.vmem %s5, 1
    %v1616 = vld [vmem:[%s1615] sm:$0x1]
    %v1618 = vlaneseq
    %v1619 = vshrl.u32 %v1618, 7
    %v1620 = vsub.s32 0, %v1619
    %v1621 = vrot.slane %v1616, %v1620
    %v1623 = vadd.f32 %v1595, %v1621
    %v1624 = vadd.f32 %v1596, %v1621
    %v1625 = vadd.f32 %v1597, %v1621
    %v1626 = vadd.f32 %v1598, %v1621
    %v1627 = vadd.f32 %v1599, %v1621
    %v1628 = vadd.f32 %v1600, %v1621
    %v1629 = vadd.f32 %v1601, %v1621
    %v1630 = vadd.f32 %v1602, %v1621
    %v1631 = vadd.f32 %v1603, %v1621
    %v1632 = vadd.f32 %v1604, %v1621
    %v1633 = vadd.f32 %v1605, %v1621
    %v1634 = vadd.f32 %v1606, %v1621
    %v1635 = vadd.f32 %v1607, %v1621
    %v1636 = vadd.f32 %v1608, %v1621
    %v1637 = vadd.f32 %v1609, %v1621
    %v1638 = vadd.f32 %v1610, %v1621
    %v1639 = vadd.f32 %v1611, %v1621
    %v1640 = vadd.f32 %v1612, %v1621
    %v1641 = vadd.f32 %v1613, %v1621
    %v1642 = vadd.f32 %v1614, %v1621
    %s1643 = scalar_lea.vmem %s6, 1
    %v1644 = vld [vmem:[%s1643] sm:$0x1]
    %s1645 = scalar_lea.vmem %s7, 1
    %v1646 = vld [vmem:[%s1645] sm:$0x1]
    %1647 = vadd.xlane.f32.xlu0 %v1623
    %v1648 = vpop.xlane.xlu0 %1647
    %1649 = vadd.xlane.f32.xlu0 %v1624
    %v1650 = vpop.xlane.xlu0 %1649
    %1651 = vadd.xlane.f32.xlu0 %v1625
    %v1652 = vpop.xlane.xlu0 %1651
    %1653 = vadd.xlane.f32.xlu0 %v1626
    %v1654 = vpop.xlane.xlu0 %1653
    %1655 = vadd.xlane.f32.xlu0 %v1627
    %v1656 = vpop.xlane.xlu0 %1655
    %1657 = vadd.xlane.f32.xlu0 %v1628
    %v1658 = vpop.xlane.xlu0 %1657
    %1659 = vadd.xlane.f32.xlu0 %v1629
    %v1660 = vpop.xlane.xlu0 %1659
    %1661 = vadd.xlane.f32.xlu0 %v1630
    %v1662 = vpop.xlane.xlu0 %1661
    %1663 = vadd.xlane.f32.xlu0 %v1631
    %v1664 = vpop.xlane.xlu0 %1663
    %1665 = vadd.xlane.f32.xlu0 %v1632
    %v1666 = vpop.xlane.xlu0 %1665
    %1667 = vadd.xlane.f32.xlu0 %v1633
    %v1668 = vpop.xlane.xlu0 %1667
    %1669 = vadd.xlane.f32.xlu0 %v1634
    %v1670 = vpop.xlane.xlu0 %1669
    %1671 = vadd.xlane.f32.xlu0 %v1635
    %v1672 = vpop.xlane.xlu0 %1671
    %1673 = vadd.xlane.f32.xlu0 %v1636
    %v1674 = vpop.xlane.xlu0 %1673
    %1675 = vadd.xlane.f32.xlu0 %v1637
    %v1676 = vpop.xlane.xlu0 %1675
    %1677 = vadd.xlane.f32.xlu0 %v1638
    %v1678 = vpop.xlane.xlu0 %1677
    %1679 = vadd.xlane.f32.xlu0 %v1639
    %v1680 = vpop.xlane.xlu0 %1679
    %1681 = vadd.xlane.f32.xlu0 %v1640
    %v1682 = vpop.xlane.xlu0 %1681
    %1683 = vadd.xlane.f32.xlu0 %v1641
    %v1684 = vpop.xlane.xlu0 %1683
    %1685 = vadd.xlane.f32.xlu0 %v1642
    %v1686 = vpop.xlane.xlu0 %1685
    %v1687 = vmul.f32 %v1648, %v787
    %v1688 = vmul.f32 %v1650, %v787
    %v1689 = vmul.f32 %v1652, %v787
    %v1690 = vmul.f32 %v1654, %v787
    %v1691 = vmul.f32 %v1656, %v787
    %v1692 = vmul.f32 %v1658, %v787
    %v1693 = vmul.f32 %v1660, %v787
    %v1694 = vmul.f32 %v1662, %v787
    %v1695 = vmul.f32 %v1664, %v787
    %v1696 = vmul.f32 %v1666, %v787
    %v1697 = vmul.f32 %v1668, %v787
    %v1698 = vmul.f32 %v1670, %v787
    %v1699 = vmul.f32 %v1672, %v787
    %v1700 = vmul.f32 %v1674, %v787
    %v1701 = vmul.f32 %v1676, %v787
    %v1702 = vmul.f32 %v1678, %v787
    %v1703 = vmul.f32 %v1680, %v787
    %v1704 = vmul.f32 %v1682, %v787
    %v1705 = vmul.f32 %v1684, %v787
    %v1706 = vmul.f32 %v1686, %v787
    %v1707 = vsub.f32 %v1623, %v1687
    %v1708 = vsub.f32 %v1624, %v1688
    %v1709 = vsub.f32 %v1625, %v1689
    %v1710 = vsub.f32 %v1626, %v1690
    %v1711 = vsub.f32 %v1627, %v1691
    %v1712 = vsub.f32 %v1628, %v1692
    %v1713 = vsub.f32 %v1629, %v1693
    %v1714 = vsub.f32 %v1630, %v1694
    %v1715 = vsub.f32 %v1631, %v1695
    %v1716 = vsub.f32 %v1632, %v1696
    %v1717 = vsub.f32 %v1633, %v1697
    %v1718 = vsub.f32 %v1634, %v1698
    %v1719 = vsub.f32 %v1635, %v1699
    %v1720 = vsub.f32 %v1636, %v1700
    %v1721 = vsub.f32 %v1637, %v1701
    %v1722 = vsub.f32 %v1638, %v1702
    %v1723 = vsub.f32 %v1639, %v1703
    %v1724 = vsub.f32 %v1640, %v1704
    %v1725 = vsub.f32 %v1641, %v1705
    %v1726 = vsub.f32 %v1642, %v1706
    %v1727 = vmul.f32 %v1707, %v1707
    %v1728 = vmul.f32 %v1708, %v1708
    %v1729 = vmul.f32 %v1709, %v1709
    %v1730 = vmul.f32 %v1710, %v1710
    %v1731 = vmul.f32 %v1711, %v1711
    %v1732 = vmul.f32 %v1712, %v1712
    %v1733 = vmul.f32 %v1713, %v1713
    %v1734 = vmul.f32 %v1714, %v1714
    %v1735 = vmul.f32 %v1715, %v1715
    %v1736 = vmul.f32 %v1716, %v1716
    %v1737 = vmul.f32 %v1717, %v1717
    %v1738 = vmul.f32 %v1718, %v1718
    %v1739 = vmul.f32 %v1719, %v1719
    %v1740 = vmul.f32 %v1720, %v1720
    %v1741 = vmul.f32 %v1721, %v1721
    %v1742 = vmul.f32 %v1722, %v1722
    %v1743 = vmul.f32 %v1723, %v1723
    %v1744 = vmul.f32 %v1724, %v1724
    %v1745 = vmul.f32 %v1725, %v1725
    %v1746 = vmul.f32 %v1726, %v1726
    %1747 = vadd.xlane.f32.xlu0 %v1727
    %v1748 = vpop.xlane.xlu0 %1747
    %1749 = vadd.xlane.f32.xlu0 %v1728
    %v1750 = vpop.xlane.xlu0 %1749
    %1751 = vadd.xlane.f32.xlu0 %v1729
    %v1752 = vpop.xlane.xlu0 %1751
    %1753 = vadd.xlane.f32.xlu0 %v1730
    %v1754 = vpop.xlane.xlu0 %1753
    %1755 = vadd.xlane.f32.xlu0 %v1731
    %v1756 = vpop.xlane.xlu0 %1755
    %1757 = vadd.xlane.f32.xlu0 %v1732
    %v1758 = vpop.xlane.xlu0 %1757
    %1759 = vadd.xlane.f32.xlu0 %v1733
    %v1760 = vpop.xlane.xlu0 %1759
    %1761 = vadd.xlane.f32.xlu0 %v1734
    %v1762 = vpop.xlane.xlu0 %1761
    %1763 = vadd.xlane.f32.xlu0 %v1735
    %v1764 = vpop.xlane.xlu0 %1763
    %1765 = vadd.xlane.f32.xlu0 %v1736
    %v1766 = vpop.xlane.xlu0 %1765
    %1767 = vadd.xlane.f32.xlu0 %v1737
    %v1768 = vpop.xlane.xlu0 %1767
    %1769 = vadd.xlane.f32.xlu0 %v1738
    %v1770 = vpop.xlane.xlu0 %1769
    %1771 = vadd.xlane.f32.xlu0 %v1739
    %v1772 = vpop.xlane.xlu0 %1771
    %1773 = vadd.xlane.f32.xlu0 %v1740
    %v1774 = vpop.xlane.xlu0 %1773
    %1775 = vadd.xlane.f32.xlu0 %v1741
    %v1776 = vpop.xlane.xlu0 %1775
    %1777 = vadd.xlane.f32.xlu0 %v1742
    %v1778 = vpop.xlane.xlu0 %1777
    %1779 = vadd.xlane.f32.xlu0 %v1743
    %v1780 = vpop.xlane.xlu0 %1779
    %1781 = vadd.xlane.f32.xlu0 %v1744
    %v1782 = vpop.xlane.xlu0 %1781
    %1783 = vadd.xlane.f32.xlu0 %v1745
    %v1784 = vpop.xlane.xlu0 %1783
    %1785 = vadd.xlane.f32.xlu0 %v1746
    %v1786 = vpop.xlane.xlu0 %1785
    %v1787 = vmul.f32 %v1748, %v787
    %v1788 = vmul.f32 %v1750, %v787
    %v1789 = vmul.f32 %v1752, %v787
    %v1790 = vmul.f32 %v1754, %v787
    %v1791 = vmul.f32 %v1756, %v787
    %v1792 = vmul.f32 %v1758, %v787
    %v1793 = vmul.f32 %v1760, %v787
    %v1794 = vmul.f32 %v1762, %v787
    %v1795 = vmul.f32 %v1764, %v787
    %v1796 = vmul.f32 %v1766, %v787
    %v1797 = vmul.f32 %v1768, %v787
    %v1798 = vmul.f32 %v1770, %v787
    %v1799 = vmul.f32 %v1772, %v787
    %v1800 = vmul.f32 %v1774, %v787
    %v1801 = vmul.f32 %v1776, %v787
    %v1802 = vmul.f32 %v1778, %v787
    %v1803 = vmul.f32 %v1780, %v787
    %v1804 = vmul.f32 %v1782, %v787
    %v1805 = vmul.f32 %v1784, %v787
    %v1806 = vmul.f32 %v1786, %v787
    %v1807 = vadd.f32 %v1787, 1e-05
    %v1808 = vadd.f32 %v1788, 1e-05
    %v1809 = vadd.f32 %v1789, 1e-05
    %v1810 = vadd.f32 %v1790, 1e-05
    %v1811 = vadd.f32 %v1791, 1e-05
    %v1812 = vadd.f32 %v1792, 1e-05
    %v1813 = vadd.f32 %v1793, 1e-05
    %v1814 = vadd.f32 %v1794, 1e-05
    %v1815 = vadd.f32 %v1795, 1e-05
    %v1816 = vadd.f32 %v1796, 1e-05
    %v1817 = vadd.f32 %v1797, 1e-05
    %v1818 = vadd.f32 %v1798, 1e-05
    %v1819 = vadd.f32 %v1799, 1e-05
    %v1820 = vadd.f32 %v1800, 1e-05
    %v1821 = vadd.f32 %v1801, 1e-05
    %v1822 = vadd.f32 %v1802, 1e-05
    %v1823 = vadd.f32 %v1803, 1e-05
    %v1824 = vadd.f32 %v1804, 1e-05
    %v1825 = vadd.f32 %v1805, 1e-05
    %v1826 = vadd.f32 %v1806, 1e-05
    %v1827 = vrsqrt.pop %v1807
    %v1828 = vrsqrt.pop %v1808
    %v1829 = vrsqrt.pop %v1809
    %v1830 = vrsqrt.pop %v1810
    %v1831 = vrsqrt.pop %v1811
    %v1832 = vrsqrt.pop %v1812
    %v1833 = vrsqrt.pop %v1813
    %v1834 = vrsqrt.pop %v1814
    %v1835 = vrsqrt.pop %v1815
    %v1836 = vrsqrt.pop %v1816
    %v1837 = vrsqrt.pop %v1817
    %v1838 = vrsqrt.pop %v1818
    %v1839 = vrsqrt.pop %v1819
    %v1840 = vrsqrt.pop %v1820
    %v1841 = vrsqrt.pop %v1821
    %v1842 = vrsqrt.pop %v1822
    %v1843 = vrsqrt.pop %v1823
    %v1844 = vrsqrt.pop %v1824
    %v1845 = vrsqrt.pop %v1825
    %v1846 = vrsqrt.pop %v1826
    %v1847 = vmul.f32 %v1707, %v1827
    %v1848 = vmul.f32 %v1708, %v1828
    %v1849 = vmul.f32 %v1709, %v1829
    %v1850 = vmul.f32 %v1710, %v1830
    %v1851 = vmul.f32 %v1711, %v1831
    %v1852 = vmul.f32 %v1712, %v1832
    %v1853 = vmul.f32 %v1713, %v1833
    %v1854 = vmul.f32 %v1714, %v1834
    %v1855 = vmul.f32 %v1715, %v1835
    %v1856 = vmul.f32 %v1716, %v1836
    %v1857 = vmul.f32 %v1717, %v1837
    %v1858 = vmul.f32 %v1718, %v1838
    %v1859 = vmul.f32 %v1719, %v1839
    %v1860 = vmul.f32 %v1720, %v1840
    %v1861 = vmul.f32 %v1721, %v1841
    %v1862 = vmul.f32 %v1722, %v1842
    %v1863 = vmul.f32 %v1723, %v1843
    %v1864 = vmul.f32 %v1724, %v1844
    %v1865 = vmul.f32 %v1725, %v1845
    %v1866 = vmul.f32 %v1726, %v1846
    %v1868 = vlaneseq
    %v1869 = vshrl.u32 %v1868, 7
    %v1870 = vsub.s32 0, %v1869
    %v1871 = vrot.slane %v1644, %v1870
    %v1873 = vmul.f32 %v1847, %v1871
    %v1874 = vmul.f32 %v1848, %v1871
    %v1875 = vmul.f32 %v1849, %v1871
    %v1876 = vmul.f32 %v1850, %v1871
    %v1877 = vmul.f32 %v1851, %v1871
    %v1878 = vmul.f32 %v1852, %v1871
    %v1879 = vmul.f32 %v1853, %v1871
    %v1880 = vmul.f32 %v1854, %v1871
    %v1881 = vmul.f32 %v1855, %v1871
    %v1882 = vmul.f32 %v1856, %v1871
    %v1883 = vmul.f32 %v1857, %v1871
    %v1884 = vmul.f32 %v1858, %v1871
    %v1885 = vmul.f32 %v1859, %v1871
    %v1886 = vmul.f32 %v1860, %v1871
    %v1887 = vmul.f32 %v1861, %v1871
    %v1888 = vmul.f32 %v1862, %v1871
    %v1889 = vmul.f32 %v1863, %v1871
    %v1890 = vmul.f32 %v1864, %v1871
    %v1891 = vmul.f32 %v1865, %v1871
    %v1892 = vmul.f32 %v1866, %v1871
    %v1894 = vlaneseq
    %v1895 = vshrl.u32 %v1894, 7
    %v1896 = vsub.s32 0, %v1895
    %v1897 = vrot.slane %v1646, %v1896
    %v1899 = vadd.f32 %v1873, %v1897
    %v1900 = vadd.f32 %v1874, %v1897
    %v1901 = vadd.f32 %v1875, %v1897
    %v1902 = vadd.f32 %v1876, %v1897
    %v1903 = vadd.f32 %v1877, %v1897
    %v1904 = vadd.f32 %v1878, %v1897
    %v1905 = vadd.f32 %v1879, %v1897
    %v1906 = vadd.f32 %v1880, %v1897
    %v1907 = vadd.f32 %v1881, %v1897
    %v1908 = vadd.f32 %v1882, %v1897
    %v1909 = vadd.f32 %v1883, %v1897
    %v1910 = vadd.f32 %v1884, %v1897
    %v1911 = vadd.f32 %v1885, %v1897
    %v1912 = vadd.f32 %v1886, %v1897
    %v1913 = vadd.f32 %v1887, %v1897
    %v1914 = vadd.f32 %v1888, %v1897
    %v1915 = vadd.f32 %v1889, %v1897
    %v1916 = vadd.f32 %v1890, %v1897
    %v1917 = vadd.f32 %v1891, %v1897
    %v1918 = vadd.f32 %v1892, %v1897
    %1919 = vst [vmem:[#allocation10] sm:$0xff] %v1899
    %1920 = vst [vmem:[#allocation10 + $0x8] sm:$0xff] %v1900
    %1921 = vst [vmem:[#allocation10 + $0x10] sm:$0xff] %v1901
    %1922 = vst [vmem:[#allocation10 + $0x18] sm:$0xff] %v1902
    %1923 = vst [vmem:[#allocation10 + $0x20] sm:$0xff] %v1903
    %1924 = vst [vmem:[#allocation10 + $0x28] sm:$0xff] %v1904
    %1925 = vst [vmem:[#allocation10 + $0x30] sm:$0xff] %v1905
    %1926 = vst [vmem:[#allocation10 + $0x38] sm:$0xff] %v1906
    %1927 = vst [vmem:[#allocation10 + $0x40] sm:$0xff] %v1907
    %1928 = vst [vmem:[#allocation10 + $0x48] sm:$0xff] %v1908
    %1929 = vst [vmem:[#allocation10 + $0x50] sm:$0xff] %v1909
    %1930 = vst [vmem:[#allocation10 + $0x58] sm:$0xff] %v1910
    %1931 = vst [vmem:[#allocation10 + $0x60] sm:$0xff] %v1911
    %1932 = vst [vmem:[#allocation10 + $0x68] sm:$0xff] %v1912
    %1933 = vst [vmem:[#allocation10 + $0x70] sm:$0xff] %v1913
    %1934 = vst [vmem:[#allocation10 + $0x78] sm:$0xff] %v1914
    %1935 = vst [vmem:[#allocation10 + $0x80] sm:$0xff] %v1915
    %1936 = vst [vmem:[#allocation10 + $0x88] sm:$0xff] %v1916
    %1937 = vst [vmem:[#allocation10 + $0x90] sm:$0xff] %v1917
    %1938 = vst [vmem:[#allocation10 + $0x98] sm:$0xff] %v1918
    // Predicated region
    $region50: #{tpu_custom_call.1} parent=1 // pred_check
      _
    $region51: #{tpu_custom_call.1} parent=1 // pred_check_branch
      %1940 = sbr.rel (0) target = $region53
    $region52: #{tpu_custom_call.1} parent=1 // pred_region
      %s1942 = ssub.s32 2560, 2560
      %1943 = vsyncadd [#allocation4], %s1942
      %s1944 = sshll.u32 [#allocation10], 4
      %s1945 = int_to_ptr.vmem [resolvable:$true] %s1944
      %1950 = dma.vmem_to_hbm [thread:$0]  %s1945, 2560, %s8, [#allocation4], 128, 128, 8
    $region53: #{tpu_custom_call.1} parent=1 // pred_fallthru
      _
    // Predicated region
    $region54: #{tpu_custom_call.1} parent=1 // pred_check
      _
    $region55: #{tpu_custom_call.1} parent=1 // pred_check_branch
      %1952 = sbr.rel (0) target = $region57
    $region56: #{tpu_custom_call.1} parent=1 // pred_region
      %1953 = dma.done [#allocation4], 2560
    $region57: #{tpu_custom_call.1} parent=1 // pred_fallthru
      _
    %1954 = vsyncpa [#allocation3], 1
    %1955 = vsyncpa [#allocation6], 1
    %1956 = vsyncpa [#allocation9], 1
    %1957 = vsyncpa [#allocation4], 1

</llo_original>
